<compile_context>
chip_gen: v6e
topology: v6e:2x2x1
jax: 0.10.0
libtpu: 0.0.40
codegen_flags: <defaults>
</compile_context>

<pallas_src>
import jax
import jax.numpy as jnp
from jax.experimental import pallas as pl
from jax.experimental.pallas import tpu as pltpu

# ---- scaled-down dimensions (module defaults noted in comments) --------------
B = 2            # number of graphs / gene-expression rows
N_NODES = 16     # total nodes over all graphs
NODE_F = 32      # node_features     (default 79)
EDGE_F = 10      # edge_features     (default 10)
N_GENES = 64     # n_genes           (default 2089)
GENE_HID = 256   # gene_hidden       (default 4096)
# gene_hidden reduction tile.  At the real GENE_HID=4096 use 512 (v5e, 16 MiB
# scoped-VMEM default) or 1024 (v6e/v7x); the toy GENE_HID=256 keeps 128 so the
# grid=2 reduction (accumulator init / finalize) path is exercised.
GH_TILE = 128
EMBED = 128      # embed_dim         (default 1024)
HIDDEN = 64      # hidden_dim        (default 512)
OUT_DIM = 128    # output_dim        (default 256)
FC_HID = 128     # fc_hidden         (default 1024)


# ---------------- fused kernel -------------------------------------------------
def fused_kernel(exp_ref, w1t_ref, b1_ref, w2_ref, b2_ref,
                 batch_row_ref, batch_col_ref, x_ref, we_ref, be_ref,
                 wgf1_ref, bgf1_ref, wf2_ref, bf2_ref, wg2_ref, bg2_ref,
                 wc1_ref, bc1_ref, wc2_ref, bc2_ref,
                 out_ref, ga_acc):
    k = pl.program_id(0)

    # ---- gene MLP: Linear(n_genes, gene_hidden) -> Dropout(id) -> ReLU ->
    #      Linear(gene_hidden, embed_dim); tiled over gene_hidden (grid axis).
    @pl.when(k == 0)
    def _init():
        ga_acc[...] = jnp.zeros_like(ga_acc)

    # w1 is pre-transposed, so this tile is a contiguous [GH_TILE, N_GENES]
    # row-slab; contract on n_genes (exp @ w1t.T) without materialising a
    # transpose in the kernel.
    h1 = jax.lax.dot_general(
        exp_ref[...], w1t_ref[...],
        dimension_numbers=(((1,), (1,)), ((), ())),
        preferred_element_type=jnp.float32)                       # [B, GH_TILE]
    h1 = jnp.maximum(h1 + b1_ref[...], 0.0)
    ga_acc[...] += jnp.dot(h1.astype(jnp.bfloat16), w2_ref[...],
                           preferred_element_type=jnp.float32)    # [B, EMBED]

    # ---- the rest of the network runs once, on the last gene_hidden tile ----
    @pl.when(k == pl.num_programs(0) - 1)
    def _finalize():
        f32 = jnp.float32
        bf = jnp.bfloat16
        neg = jnp.float32(-1e30)

        ga = ga_acc[...] + b2_ref[...]                            # [B, E] f32

        # graph-membership one-hots built in-kernel from `batch` (no HBM mask).
        seg_bn = jax.lax.broadcasted_iota(jnp.int32, (B, N_NODES), 0)
        mask_bn = (jnp.broadcast_to(batch_row_ref[...], (B, N_NODES))
                   == seg_bn).astype(f32)                         # [B, N]
        seg_nb = jax.lax.broadcasted_iota(jnp.int32, (N_NODES, B), 1)
        member_nb = (jnp.broadcast_to(batch_col_ref[...], (N_NODES, B))
                     == seg_nb)                                   # [N, B] bool
        onehot_nb = member_nb.astype(f32)

        # x_ga = ga[batch]  (== repeat_interleave over the sorted batch),
        # done as an exact one-hot matmul in f32.
        x_ga = jnp.dot(onehot_nb, ga, preferred_element_type=f32)  # [N, E]

        # stand-in GAT encoder (Linear node_features -> embed_dim) + residual.
        enc = (jnp.dot(x_ref[...], we_ref[...], preferred_element_type=f32)
               + be_ref[...])
        z = (enc + x_ga).astype(bf)                                # [N, E]

        # fused gate_nn / nn first layers: one MXU pass over [wg1 | wf1].
        a = jnp.dot(z, wgf1_ref[...], preferred_element_type=f32)
        a = jnp.maximum(a + bgf1_ref[...], 0.0)                    # [N, 2H] f32

        # nn second layer (gate-half rows of the fused weight are zero-padded).
        # TODO(synk): at the real H=512 slice a[:, H:] and use the unpadded wf2.
        h = (jnp.dot(a.astype(bf), wf2_ref[...], preferred_element_type=f32)
             + bf2_ref[...])                                       # [N, OUT]

        # gate_nn second layer (Linear(H, 1)) as a VPU lane reduction — avoids
        # a 1-column MXU matmul / [N, 1] masked-store path.
        gate = (jnp.sum(a * wg2_ref[...], axis=-1, keepdims=True)
                + bg2_ref[0, 0])                                   # [N, 1]

        # GlobalAttention: PER-SEGMENT max-stabilised softmax of gate over each
        # graph, then weighted sum of h.  (Per-segment max fixes underflow when
        # one graph's gates sit far below the global max.)
        gate_nb = jnp.where(member_nb,
                            jnp.broadcast_to(gate, (N_NODES, B)), neg)
        seg_max = jnp.max(gate_nb, axis=0, keepdims=True)          # [1, B]
        node_max = jnp.max(
            jnp.where(member_nb,
                      jnp.broadcast_to(seg_max, (N_NODES, B)), neg),
            axis=-1, keepdims=True)                                # [N, 1]
        e = jnp.exp(jnp.minimum(gate - node_max, 0.0))             # [N, 1]
        seg_sum = jnp.dot(mask_bn, e, preferred_element_type=f32)  # [B, 1]
        denom = jnp.dot(onehot_nb, seg_sum,
                        preferred_element_type=f32)                # [N, 1]
        w = e * pl.reciprocal(jnp.maximum(denom, 1e-30), approx=True)
        pool = jnp.dot(mask_bn, h * w, preferred_element_type=f32)  # [B, OUT]

        # fc: ReLU -> Dropout(id) -> Linear -> Sigmoid -> Linear(fc_hidden, 1)
        zz = jnp.maximum(pool, 0.0).astype(bf)
        zz = jax.nn.sigmoid(
            jnp.dot(zz, wc1_ref[...], preferred_element_type=f32) + bc1_ref[...])
        # final 1-unit linear as a VPU reduction (avoids 1-column MXU matmul).
        out_ref[...] = (jnp.sum(zz * wc2_ref[...], axis=-1, keepdims=True)
                        + bc2_ref[0, 0])                           # [B, 1]


def _const_spec(shape):
    rank = len(shape)
    return pl.BlockSpec(shape, lambda k, _r=rank: (0,) * _r)


def prepare_params(params):
    """One-time (outside-jit) weight layout prep: casts / fusions / transposes.

    Doing this once here instead of inside the jitted forward removes per-call
    XLA ops that, at the real model dims, would move ~3x more HBM bytes than
    the kernel's own dominant w1 stream.
    """
    bf = jnp.bfloat16
    H = HIDDEN
    return {
        # gene MLP: w1 stored transposed so the kernel streams contiguous
        # [GH_TILE, N_GENES] row-slabs (one big DMA per grid step).
        "w1t": params["w1"].T.astype(bf),           # [GENE_HID, N_GENES]
        "b1": params["b1"],                         # [1, GENE_HID]
        "w2": params["w2"].astype(bf),              # [GENE_HID, EMBED]
        "b2": params["b2"],
        # stand-in encoder
        "we": params["we"].astype(bf),
        "be": params["be"],
        # fused gate_nn / nn first layers: [wg1 | wf1]
        "wgf1": jnp.concatenate([params["wg1"], params["wf1"]], axis=1).astype(bf),
        "bgf1": jnp.concatenate([params["bg1"], params["bf1"]], axis=1),
        # nn second layer, zero-padded over the gate half of the fused hidden.
        "wf2p": jnp.concatenate(
            [jnp.zeros((H, OUT_DIM), jnp.float32), params["wf2"]],
            axis=0).astype(bf),                     # [2H, OUT]
        "bf2": params["bf2"],
        # gate_nn second layer Linear(H, 1) as a row vector (lane reduction).
        "wg2r": jnp.concatenate(
            [params["wg2"].T, jnp.zeros((1, H), jnp.float32)], axis=1),  # [1, 2H]
        "bg2": params["bg2"],                       # (1, 1) -> SMEM scalar
        # fc head
        "wc1": params["wc1"].astype(bf),
        "bc1": params["bc1"],
        "wc2r": params["wc2"].T,                    # [1, FC_HID]
        "bc2": params["bc2"],                       # (1, 1) -> SMEM scalar
    }


def gatmannp_forward(exp, x, edge_index, edge_attr, batch, prep):
    del edge_index, edge_attr  # TODO(synk): unused by the stand-in encoder
    bf = jnp.bfloat16
    H = HIDDEN

    batch_row = batch.reshape(1, N_NODES).astype(jnp.int32)
    batch_col = batch.reshape(N_NODES, 1).astype(jnp.int32)

    smem_spec = pl.BlockSpec(memory_space=pltpu.MemorySpace.SMEM)

    # arrays and their BlockSpecs built together so counts can never mismatch.
    args_and_specs = [
        (exp.astype(bf),   _const_spec((B, N_GENES))),
        (prep["w1t"],      pl.BlockSpec((GH_TILE, N_GENES), lambda k: (k, 0))),
        (prep["b1"],       pl.BlockSpec((1, GH_TILE),       lambda k: (0, k))),
        (prep["w2"],       pl.BlockSpec((GH_TILE, EMBED),   lambda k: (k, 0))),
        (prep["b2"],       _const_spec((1, EMBED))),
        (batch_row,        _const_spec((1, N_NODES))),
        (batch_col,        _const_spec((N_NODES, 1))),
        (x.astype(bf),     _const_spec((N_NODES, NODE_F))),
        (prep["we"],       _const_spec((NODE_F, EMBED))),
        (prep["be"],       _const_spec((1, EMBED))),
        (prep["wgf1"],     _const_spec((EMBED, 2 * H))),
        (prep["bgf1"],     _const_spec((1, 2 * H))),
        (prep["wf2p"],     _const_spec((2 * H, OUT_DIM))),
        (prep["bf2"],      _const_spec((1, OUT_DIM))),
        (prep["wg2r"],     _const_spec((1, 2 * H))),
        (prep["bg2"],      smem_spec),
        (prep["wc1"],      _const_spec((OUT_DIM, FC_HID))),
        (prep["bc1"],      _const_spec((1, FC_HID))),
        (prep["wc2r"],     _const_spec((1, FC_HID))),
        (prep["bc2"],      smem_spec),
    ]
    arrays, in_specs = zip(*args_and_specs)

    # NOTE: at the real dims (GENE_HID=4096, GH_TILE>=512) the double-buffered
    # w1t/w2 slabs plus resident tail weights fit v6e/v7x scoped defaults; on
    # v5e either keep GH_TILE=512 or raise vmem_limit_bytes here.
    return pl.pallas_call(
        fused_kernel,
        out_shape=jax.ShapeDtypeStruct((B, 1), jnp.float32),
        grid_spec=pltpu.PrefetchScalarGridSpec(
            num_scalar_prefetch=0,
            grid=(GENE_HID // GH_TILE,),
            in_specs=list(in_specs),
            out_specs=pl.BlockSpec((B, 1), lambda k: (0, 0)),
            scratch_shapes=[pltpu.VMEM((B, EMBED), jnp.float32)],
        ),
        compiler_params=pltpu.CompilerParams(
            dimension_semantics=("arbitrary",)),   # gene_hidden is a reduction axis
    )(*arrays)


# ---------------- pure-JAX reference (mirrors the bf16 MXU / f32 acc policy) ---
def reference(exp, x, batch, params):
    bf = jnp.bfloat16
    dot = lambda a, b: jnp.dot(a.astype(bf), b.astype(bf),
                               preferred_element_type=jnp.float32)
    h1 = jnp.maximum(dot(exp, params["w1"]) + params["b1"], 0.0)
    ga = dot(h1, params["w2"]) + params["b2"]
    x_ga = ga[batch]
    z = dot(x, params["we"]) + params["be"] + x_ga
    g = jnp.maximum(dot(z, params["wg1"]) + params["bg1"], 0.0)
    f = jnp.maximum(dot(z, params["wf1"]) + params["bf1"], 0.0)
    gate = g @ params["wg2"] + params["bg2"]                # [N, 1]
    h = dot(f, params["wf2"]) + params["bf2"]               # [N, OUT]
    member = batch[None, :] == jnp.arange(B)[:, None]       # [B, N]
    s = jnp.where(member, gate[:, 0][None, :], -1e30)
    e = jnp.exp(s - jnp.max(s, axis=-1, keepdims=True)) * member
    w = e / jnp.sum(e, axis=-1, keepdims=True)
    pool = w @ h
    zz = jax.nn.sigmoid(dot(jnp.maximum(pool, 0.0), params["wc1"]) + params["bc1"])
    return zz @ params["wc2"] + params["bc2"]


def init_params(key):
    def dense(k, fan_in, fan_out):
        kw, kb = jax.random.split(k)
        scale = 1.0 / jnp.sqrt(fan_in)
        w = jax.random.normal(kw, (fan_in, fan_out), jnp.float32) * scale
        b = jax.random.normal(kb, (1, fan_out), jnp.float32) * scale
        return w, b

    ks = jax.random.split(key, 8)
    p = {}
    p["w1"], p["b1"] = dense(ks[0], N_GENES, GENE_HID)    # gene linear 1
    p["w2"], p["b2"] = dense(ks[1], GENE_HID, EMBED)      # gene linear 2
    p["we"], p["be"] = dense(ks[2], NODE_F, EMBED)        # stand-in encoder
    p["wg1"], p["bg1"] = dense(ks[3], EMBED, HIDDEN)      # gate_nn linear 1
    p["wg2"], p["bg2"] = dense(ks[4], HIDDEN, 1)          # gate_nn linear 2
    p["wf1"], p["bf1"] = dense(ks[5], EMBED, HIDDEN)      # nn linear 1
    p["wf2"], p["bf2"] = dense(ks[6], HIDDEN, OUT_DIM)    # nn linear 2
    kc1, kc2 = jax.random.split(ks[7])
    p["wc1"], p["bc1"] = dense(kc1, OUT_DIM, FC_HID)      # fc linear 1
    p["wc2"], p["bc2"] = dense(kc2, FC_HID, 1)            # fc linear 2
    return p


if __name__ == "__main__":
    key = jax.random.PRNGKey(0)
    k_exp, k_x, k_edge, k_param = jax.random.split(key, 4)

    exp = jax.random.normal(k_exp, (B, N_GENES), jnp.float32)
    x = jax.random.normal(k_x, (N_NODES, NODE_F), jnp.float32)
    n_edges = 32
    edge_index = jax.random.randint(k_edge, (2, n_edges), 0, N_NODES, jnp.int32)
    edge_attr = jax.random.normal(k_edge, (n_edges, EDGE_F), jnp.float32)
    # sorted batch vector (repeat_interleave(ga, bincount(batch)) == ga[batch])
    batch = jnp.repeat(jnp.arange(B, dtype=jnp.int32), N_NODES // B)

    params = init_params(k_param)
    prep = prepare_params(params)      # one-time weight layout prep, outside jit

    fwd = jax.jit(gatmannp_forward)
    out = fwd(exp, x, edge_index, edge_attr, batch, prep)
    out = jax.block_until_ready(out)

    ref = reference(exp, x, batch, params)
    assert out.shape == (B, 1), out.shape
    assert jnp.allclose(out, ref, rtol=2e-2, atol=2e-2), (out, ref)
    print("KERNEL_OK")
</pallas_src>

<mosaic_0001>
module attributes {stable_mosaic.version = 11 : i64} {
  func.func @fused_kernel(%arg0: i32, %arg1: memref<2x64xbf16, #tpu.memory_space<vmem>>, %arg2: memref<128x64xbf16, #tpu.memory_space<vmem>>, %arg3: memref<1x128xf32, #tpu.memory_space<vmem>>, %arg4: memref<128x128xbf16, #tpu.memory_space<vmem>>, %arg5: memref<1x128xf32, #tpu.memory_space<vmem>>, %arg6: memref<1x16xi32, #tpu.memory_space<vmem>>, %arg7: memref<16x1xi32, #tpu.memory_space<vmem>>, %arg8: memref<16x32xbf16, #tpu.memory_space<vmem>>, %arg9: memref<32x128xbf16, #tpu.memory_space<vmem>>, %arg10: memref<1x128xf32, #tpu.memory_space<vmem>>, %arg11: memref<128x128xbf16, #tpu.memory_space<vmem>>, %arg12: memref<1x128xf32, #tpu.memory_space<vmem>>, %arg13: memref<128x128xbf16, #tpu.memory_space<vmem>>, %arg14: memref<1x128xf32, #tpu.memory_space<vmem>>, %arg15: memref<1x128xf32, #tpu.memory_space<vmem>>, %arg16: memref<1x1xf32, #tpu.memory_space<smem>>, %arg17: memref<128x128xbf16, #tpu.memory_space<vmem>>, %arg18: memref<1x128xf32, #tpu.memory_space<vmem>>, %arg19: memref<1x128xf32, #tpu.memory_space<vmem>>, %arg20: memref<1x1xf32, #tpu.memory_space<smem>>, %arg21: memref<2x1xf32, #tpu.memory_space<vmem>>, %arg22: memref<2x128xf32, #tpu.memory_space<vmem>>) attributes {dimension_semantics = [#tpu.dimension_semantics<arbitrary>], iteration_bounds = array<i64: 2>, scalar_prefetch = 0 : i64, scratch_operands = 1 : i64, tpu.core_type = #tpu.core_type<tc>, window_params = [{pipeline_mode = #tpu.pipeline_mode<synchronous>, transform_indices = @transform_0, window_bounds = array<i64: 2, 64>}, {transform_indices = @transform_1, window_bounds = array<i64: 128, 64>}, {transform_indices = @transform_2, window_bounds = array<i64: 1, 128>}, {transform_indices = @transform_3, window_bounds = array<i64: 128, 128>}, {pipeline_mode = #tpu.pipeline_mode<synchronous>, transform_indices = @transform_4, window_bounds = array<i64: 1, 128>}, {pipeline_mode = #tpu.pipeline_mode<synchronous>, transform_indices = @transform_5, window_bounds = array<i64: 1, 16>}, {pipeline_mode = #tpu.pipeline_mode<synchronous>, transform_indices = @transform_6, window_bounds = array<i64: 16, 1>}, {pipeline_mode = #tpu.pipeline_mode<synchronous>, transform_indices = @transform_7, window_bounds = array<i64: 16, 32>}, {pipeline_mode = #tpu.pipeline_mode<synchronous>, transform_indices = @transform_8, window_bounds = array<i64: 32, 128>}, {pipeline_mode = #tpu.pipeline_mode<synchronous>, transform_indices = @transform_9, window_bounds = array<i64: 1, 128>}, {pipeline_mode = #tpu.pipeline_mode<synchronous>, transform_indices = @transform_10, window_bounds = array<i64: 128, 128>}, {pipeline_mode = #tpu.pipeline_mode<synchronous>, transform_indices = @transform_11, window_bounds = array<i64: 1, 128>}, {pipeline_mode = #tpu.pipeline_mode<synchronous>, transform_indices = @transform_12, window_bounds = array<i64: 128, 128>}, {pipeline_mode = #tpu.pipeline_mode<synchronous>, transform_indices = @transform_13, window_bounds = array<i64: 1, 128>}, {pipeline_mode = #tpu.pipeline_mode<synchronous>, transform_indices = @transform_14, window_bounds = array<i64: 1, 128>}, {transform_indices = @transform_15, window_bounds = array<i64: 1, 1>}, {pipeline_mode = #tpu.pipeline_mode<synchronous>, transform_indices = @transform_16, window_bounds = array<i64: 128, 128>}, {pipeline_mode = #tpu.pipeline_mode<synchronous>, transform_indices = @transform_17, window_bounds = array<i64: 1, 128>}, {pipeline_mode = #tpu.pipeline_mode<synchronous>, transform_indices = @transform_18, window_bounds = array<i64: 1, 128>}, {transform_indices = @transform_19, window_bounds = array<i64: 1, 1>}, {pipeline_mode = #tpu.pipeline_mode<synchronous>, transform_indices = @transform_20, window_bounds = array<i64: 2, 1>}]} {
    %c0_i32 = arith.constant 0 : i32
    %0 = arith.cmpi eq, %arg0, %c0_i32 : i32
    %1 = arith.extui %0 : i1 to i32
    %c0_i32_0 = arith.constant 0 : i32
    %2 = arith.cmpi ne, %1, %c0_i32_0 : i32
    scf.if %2 {
      %cst_15 = arith.constant 0.000000e+00 : f32
      %20 = vector.broadcast %cst_15 : f32 to vector<2x128xf32>
      %c0_16 = arith.constant 0 : index
      %c0_17 = arith.constant 0 : index
      %21 = vector.load %arg22[%c0_16, %c0_17] : memref<2x128xf32, #tpu.memory_space<vmem>>, vector<2x128xf32>
      tpu.vector_store %arg22[%c0_16, %c0_17], %20 {strides = array<i32>} : memref<2x128xf32, #tpu.memory_space<vmem>>, vector<2x128xf32>,
    } else {
    }
    %c0 = arith.constant 0 : index
    %c0_1 = arith.constant 0 : index
    %3 = vector.load %arg1[%c0, %c0_1] : memref<2x64xbf16, #tpu.memory_space<vmem>>, vector<2x64xbf16>
    %c0_2 = arith.constant 0 : index
    %c0_3 = arith.constant 0 : index
    %4 = vector.load %arg2[%c0_2, %c0_3] : memref<128x64xbf16, #tpu.memory_space<vmem>>, vector<128x64xbf16>
    %cst = arith.constant dense<0.000000e+00> : vector<2x128xf32>
    %5 = tpu.matmul %3, %4, %cst {dimension_numbers = #tpu.dot_dimension_numbers<[1], [1], [0], [0], [0, 0, 1, 0], [], []>} : vector<2x64xbf16>, vector<128x64xbf16>, vector<2x128xf32> -> vector<2x128xf32>
    %c0_4 = arith.constant 0 : index
    %c0_5 = arith.constant 0 : index
    %6 = vector.load %arg3[%c0_4, %c0_5] : memref<1x128xf32, #tpu.memory_space<vmem>>, vector<1x128xf32>
    %7 = vector.broadcast %6 : vector<1x128xf32> to vector<2x128xf32>
    %8 = arith.addf %5, %7 : vector<2x128xf32>
    %cst_6 = arith.constant 0.000000e+00 : f32
    %9 = vector.broadcast %cst_6 : f32 to vector<2x128xf32>
    %10 = arith.maximumf %8, %9 : vector<2x128xf32>
    %c0_7 = arith.constant 0 : index
    %c0_8 = arith.constant 0 : index
    %11 = vector.load %arg22[%c0_7, %c0_8] : memref<2x128xf32, #tpu.memory_space<vmem>>, vector<2x128xf32>
    %12 = arith.truncf %10 : vector<2x128xf32> to vector<2x128xbf16>
    %c0_9 = arith.constant 0 : index
    %c0_10 = arith.constant 0 : index
    %13 = vector.load %arg4[%c0_9, %c0_10] : memref<128x128xbf16, #tpu.memory_space<vmem>>, vector<128x128xbf16>
    %cst_11 = arith.constant dense<0.000000e+00> : vector<2x128xf32>
    %14 = tpu.matmul %12, %13, %cst_11 {dimension_numbers = #tpu.dot_dimension_numbers<[1], [0], [0], [1], [0, 0, 1, 1], [], []>} : vector<2x128xbf16>, vector<128x128xbf16>, vector<2x128xf32> -> vector<2x128xf32>
    %15 = arith.addf %11, %14 : vector<2x128xf32>
    %c0_12 = arith.constant 0 : index
    %c0_13 = arith.constant 0 : index
    %16 = vector.load %arg22[%c0_12, %c0_13] : memref<2x128xf32, #tpu.memory_space<vmem>>, vector<2x128xf32>
    tpu.vector_store %arg22[%c0_12, %c0_13], %15 {strides = array<i32>} : memref<2x128xf32, #tpu.memory_space<vmem>>, vector<2x128xf32>,
    %c1_i32 = arith.constant 1 : i32
    %17 = arith.cmpi eq, %arg0, %c1_i32 : i32
    %18 = arith.extui %17 : i1 to i32
    %c0_i32_14 = arith.constant 0 : i32
    %19 = arith.cmpi ne, %18, %c0_i32_14 : i32
    scf.if %19 {
      %c0_15 = arith.constant 0 : index
      %c0_16 = arith.constant 0 : index
      %20 = vector.load %arg22[%c0_15, %c0_16] : memref<2x128xf32, #tpu.memory_space<vmem>>, vector<2x128xf32>
      %c0_17 = arith.constant 0 : index
      %c0_18 = arith.constant 0 : index
      %21 = vector.load %arg5[%c0_17, %c0_18] : memref<1x128xf32, #tpu.memory_space<vmem>>, vector<1x128xf32>
      %22 = vector.broadcast %21 : vector<1x128xf32> to vector<2x128xf32>
      %23 = arith.addf %20, %22 : vector<2x128xf32>
      %24 = tpu.iota {dimensions = array<i32: 0>} : vector<2x16xi32>
      %c0_19 = arith.constant 0 : index
      %c0_20 = arith.constant 0 : index
      %25 = vector.load %arg6[%c0_19, %c0_20] : memref<1x16xi32, #tpu.memory_space<vmem>>, vector<1x16xi32>
      %26 = vector.shape_cast %25 : vector<1x16xi32> to vector<1x16xi32>
      %27 = vector.broadcast %26 : vector<1x16xi32> to vector<2x16xi32>
      %28 = arith.cmpi eq, %27, %24 : vector<2x16xi32>
      %29 = arith.extui %28 : vector<2x16xi1> to vector<2x16xi32>
      %30 = arith.sitofp %29 : vector<2x16xi32> to vector<2x16xf32>
      %31 = tpu.iota {dimensions = array<i32: 1>} : vector<16x2xi32>
      %c0_21 = arith.constant 0 : index
      %c0_22 = arith.constant 0 : index
      %32 = vector.load %arg7[%c0_21, %c0_22] : memref<16x1xi32, #tpu.memory_space<vmem>>, vector<16x1xi32>
      %33 = vector.shape_cast %32 : vector<16x1xi32> to vector<16x1xi32>
      %34 = vector.broadcast %33 : vector<16x1xi32> to vector<16x2xi32>
      %35 = arith.cmpi eq, %34, %31 : vector<16x2xi32>
      %36 = arith.extui %35 : vector<16x2xi1> to vector<16x2xi32>
      %37 = arith.sitofp %36 : vector<16x2xi32> to vector<16x2xf32>
      %cst_23 = arith.constant dense<0.000000e+00> : vector<16x128xf32>
      %38 = tpu.matmul %37, %23, %cst_23 {dimension_numbers = #tpu.dot_dimension_numbers<[1], [0], [0], [1], [0, 0, 1, 1], [], []>} : vector<16x2xf32>, vector<2x128xf32>, vector<16x128xf32> -> vector<16x128xf32>
      %c0_24 = arith.constant 0 : index
      %c0_25 = arith.constant 0 : index
      %39 = vector.load %arg8[%c0_24, %c0_25] : memref<16x32xbf16, #tpu.memory_space<vmem>>, vector<16x32xbf16>
      %c0_26 = arith.constant 0 : index
      %c0_27 = arith.constant 0 : index
      %40 = vector.load %arg9[%c0_26, %c0_27] : memref<32x128xbf16, #tpu.memory_space<vmem>>, vector<32x128xbf16>
      %cst_28 = arith.constant dense<0.000000e+00> : vector<16x128xf32>
      %41 = tpu.matmul %39, %40, %cst_28 {dimension_numbers = #tpu.dot_dimension_numbers<[1], [0], [0], [1], [0, 0, 1, 1], [], []>} : vector<16x32xbf16>, vector<32x128xbf16>, vector<16x128xf32> -> vector<16x128xf32>
      %c0_29 = arith.constant 0 : index
      %c0_30 = arith.constant 0 : index
      %42 = vector.load %arg10[%c0_29, %c0_30] : memref<1x128xf32, #tpu.memory_space<vmem>>, vector<1x128xf32>
      %43 = vector.broadcast %42 : vector<1x128xf32> to vector<16x128xf32>
      %44 = arith.addf %41, %43 : vector<16x128xf32>
      %45 = arith.addf %44, %38 : vector<16x128xf32>
      %46 = arith.truncf %45 : vector<16x128xf32> to vector<16x128xbf16>
      %c0_31 = arith.constant 0 : index
      %c0_32 = arith.constant 0 : index
      %47 = vector.load %arg11[%c0_31, %c0_32] : memref<128x128xbf16, #tpu.memory_space<vmem>>, vector<128x128xbf16>
      %cst_33 = arith.constant dense<0.000000e+00> : vector<16x128xf32>
      %48 = tpu.matmul %46, %47, %cst_33 {dimension_numbers = #tpu.dot_dimension_numbers<[1], [0], [0], [1], [0, 0, 1, 1], [], []>} : vector<16x128xbf16>, vector<128x128xbf16>, vector<16x128xf32> -> vector<16x128xf32>
      %c0_34 = arith.constant 0 : index
      %c0_35 = arith.constant 0 : index
      %49 = vector.load %arg12[%c0_34, %c0_35] : memref<1x128xf32, #tpu.memory_space<vmem>>, vector<1x128xf32>
      %50 = vector.broadcast %49 : vector<1x128xf32> to vector<16x128xf32>
      %51 = arith.addf %48, %50 : vector<16x128xf32>
      %cst_36 = arith.constant 0.000000e+00 : f32
      %52 = vector.broadcast %cst_36 : f32 to vector<16x128xf32>
      %53 = arith.maximumf %51, %52 : vector<16x128xf32>
      %54 = arith.truncf %53 : vector<16x128xf32> to vector<16x128xbf16>
      %c0_37 = arith.constant 0 : index
      %c0_38 = arith.constant 0 : index
      %55 = vector.load %arg13[%c0_37, %c0_38] : memref<128x128xbf16, #tpu.memory_space<vmem>>, vector<128x128xbf16>
      %cst_39 = arith.constant dense<0.000000e+00> : vector<16x128xf32>
      %56 = tpu.matmul %54, %55, %cst_39 {dimension_numbers = #tpu.dot_dimension_numbers<[1], [0], [0], [1], [0, 0, 1, 1], [], []>} : vector<16x128xbf16>, vector<128x128xbf16>, vector<16x128xf32> -> vector<16x128xf32>
      %c0_40 = arith.constant 0 : index
      %c0_41 = arith.constant 0 : index
      %57 = vector.load %arg14[%c0_40, %c0_41] : memref<1x128xf32, #tpu.memory_space<vmem>>, vector<1x128xf32>
      %58 = vector.broadcast %57 : vector<1x128xf32> to vector<16x128xf32>
      %59 = arith.addf %56, %58 : vector<16x128xf32>
      %c0_42 = arith.constant 0 : index
      %c0_43 = arith.constant 0 : index
      %60 = vector.load %arg15[%c0_42, %c0_43] : memref<1x128xf32, #tpu.memory_space<vmem>>, vector<1x128xf32>
      %61 = vector.broadcast %60 : vector<1x128xf32> to vector<16x128xf32>
      %62 = arith.mulf %53, %61 : vector<16x128xf32>
      %cst_44 = arith.constant dense<0.000000e+00> : vector<16xf32>
      %63 = vector.multi_reduction <add>, %62, %cst_44 [1] : vector<16x128xf32> to vector<16xf32>
      %64 = vector.shape_cast %63 : vector<16xf32> to vector<16x1xf32>
      %c0_45 = arith.constant 0 : index
      %c0_46 = arith.constant 0 : index
      %65 = memref.load %arg16[%c0_45, %c0_46] : memref<1x1xf32, #tpu.memory_space<smem>>
      %66 = vector.broadcast %65 : f32 to vector<16x1xf32>
      %67 = arith.addf %64, %66 : vector<16x1xf32>
      %68 = vector.shape_cast %67 : vector<16x1xf32> to vector<16x1xf32>
      %69 = vector.broadcast %68 : vector<16x1xf32> to vector<16x2xf32>
      %cst_47 = arith.constant -1.000000e+30 : f32
      %70 = vector.broadcast %cst_47 : f32 to vector<16x2xf32>
      %71 = arith.select %35, %69, %70 : vector<16x2xi1>, vector<16x2xf32>
      %cst_48 = arith.constant dense<0xFF800000> : vector<2xf32>
      %72 = vector.multi_reduction <maximumf>, %71, %cst_48 [0] : vector<16x2xf32> to vector<2xf32>
      %73 = vector.shape_cast %72 : vector<2xf32> to vector<1x2xf32>
      %74 = vector.shape_cast %73 : vector<1x2xf32> to vector<1x2xf32>
      %75 = vector.broadcast %74 : vector<1x2xf32> to vector<16x2xf32>
      %cst_49 = arith.constant -1.000000e+30 : f32
      %76 = vector.broadcast %cst_49 : f32 to vector<16x2xf32>
      %77 = arith.select %35, %75, %76 : vector<16x2xi1>, vector<16x2xf32>
      %cst_50 = arith.constant dense<0xFF800000> : vector<16xf32>
      %78 = vector.multi_reduction <maximumf>, %77, %cst_50 [1] : vector<16x2xf32> to vector<16xf32>
      %79 = vector.shape_cast %78 : vector<16xf32> to vector<16x1xf32>
      %80 = arith.subf %67, %79 : vector<16x1xf32>
      %cst_51 = arith.constant 0.000000e+00 : f32
      %81 = vector.broadcast %cst_51 : f32 to vector<16x1xf32>
      %82 = arith.minimumf %80, %81 : vector<16x1xf32>
      %83 = math.exp %82 : vector<16x1xf32>
      %cst_52 = arith.constant dense<0.000000e+00> : vector<2x1xf32>
      %84 = tpu.matmul %30, %83, %cst_52 {dimension_numbers = #tpu.dot_dimension_numbers<[1], [0], [0], [1], [0, 0, 1, 1], [], []>} : vector<2x16xf32>, vector<16x1xf32>, vector<2x1xf32> -> vector<2x1xf32>
      %cst_53 = arith.constant dense<0.000000e+00> : vector<16x1xf32>
      %85 = tpu.matmul %37, %84, %cst_53 {dimension_numbers = #tpu.dot_dimension_numbers<[1], [0], [0], [1], [0, 0, 1, 1], [], []>} : vector<16x2xf32>, vector<2x1xf32>, vector<16x1xf32> -> vector<16x1xf32>
      %cst_54 = arith.constant 1.000000e-30 : f32
      %86 = vector.broadcast %cst_54 : f32 to vector<16x1xf32>
      %87 = arith.maximumf %85, %86 : vector<16x1xf32>
      %88 = tpu.reciprocal %87 {approx = true} : vector<16x1xf32> -> vector<16x1xf32>
      %89 = arith.mulf %83, %88 : vector<16x1xf32>
      %90 = vector.broadcast %89 : vector<16x1xf32> to vector<16x128xf32>
      %91 = arith.mulf %59, %90 : vector<16x128xf32>
      %cst_55 = arith.constant dense<0.000000e+00> : vector<2x128xf32>
      %92 = tpu.matmul %30, %91, %cst_55 {dimension_numbers = #tpu.dot_dimension_numbers<[1], [0], [0], [1], [0, 0, 1, 1], [], []>} : vector<2x16xf32>, vector<16x128xf32>, vector<2x128xf32> -> vector<2x128xf32>
      %cst_56 = arith.constant 0.000000e+00 : f32
      %93 = vector.broadcast %cst_56 : f32 to vector<2x128xf32>
      %94 = arith.maximumf %92, %93 : vector<2x128xf32>
      %95 = arith.truncf %94 : vector<2x128xf32> to vector<2x128xbf16>
      %c0_57 = arith.constant 0 : index
      %c0_58 = arith.constant 0 : index
      %96 = vector.load %arg17[%c0_57, %c0_58] : memref<128x128xbf16, #tpu.memory_space<vmem>>, vector<128x128xbf16>
      %cst_59 = arith.constant dense<0.000000e+00> : vector<2x128xf32>
      %97 = tpu.matmul %95, %96, %cst_59 {dimension_numbers = #tpu.dot_dimension_numbers<[1], [0], [0], [1], [0, 0, 1, 1], [], []>} : vector<2x128xbf16>, vector<128x128xbf16>, vector<2x128xf32> -> vector<2x128xf32>
      %c0_60 = arith.constant 0 : index
      %c0_61 = arith.constant 0 : index
      %98 = vector.load %arg18[%c0_60, %c0_61] : memref<1x128xf32, #tpu.memory_space<vmem>>, vector<1x128xf32>
      %99 = vector.broadcast %98 : vector<1x128xf32> to vector<2x128xf32>
      %100 = arith.addf %97, %99 : vector<2x128xf32>
      %101 = arith.negf %100 : vector<2x128xf32>
      %102 = math.exp %101 : vector<2x128xf32>
      %cst_62 = arith.constant 1.000000e+00 : f32
      %103 = vector.broadcast %cst_62 : f32 to vector<2x128xf32>
      %104 = arith.addf %103, %102 : vector<2x128xf32>
      %105 = arith.divf %103, %104 : vector<2x128xf32>
      %c0_63 = arith.constant 0 : index
      %c0_64 = arith.constant 0 : index
      %106 = vector.load %arg19[%c0_63, %c0_64] : memref<1x128xf32, #tpu.memory_space<vmem>>, vector<1x128xf32>
      %107 = vector.broadcast %106 : vector<1x128xf32> to vector<2x128xf32>
      %108 = arith.mulf %105, %107 : vector<2x128xf32>
      %cst_65 = arith.constant dense<0.000000e+00> : vector<2xf32>
      %109 = vector.multi_reduction <add>, %108, %cst_65 [1] : vector<2x128xf32> to vector<2xf32>
      %110 = vector.shape_cast %109 : vector<2xf32> to vector<2x1xf32>
      %c0_66 = arith.constant 0 : index
      %c0_67 = arith.constant 0 : index
      %111 = memref.load %arg20[%c0_66, %c0_67] : memref<1x1xf32, #tpu.memory_space<smem>>
      %112 = vector.broadcast %111 : f32 to vector<2x1xf32>
      %113 = arith.addf %110, %112 : vector<2x1xf32>
      %c0_68 = arith.constant 0 : index
      %c0_69 = arith.constant 0 : index
      %114 = vector.load %arg21[%c0_68, %c0_69] : memref<2x1xf32, #tpu.memory_space<vmem>>, vector<2x1xf32>
      tpu.vector_store %arg21[%c0_68, %c0_69], %113 {strides = array<i32>} : memref<2x1xf32, #tpu.memory_space<vmem>>, vector<2x1xf32>,
    } else {
    }
    return
  }
  func.func @transform_0(%arg0: i32) -> (i32, i32) {
    %c0_i32 = arith.constant 0 : i32
    %c0_i32_0 = arith.constant 0 : i32
    %c0_i32_1 = arith.constant 0 : i32
    return %c0_i32, %c0_i32_0 : i32, i32
  }
  func.func @transform_1(%arg0: i32) -> (i32, i32) {
    %c0_i32 = arith.constant 0 : i32
    %c0_i32_0 = arith.constant 0 : i32
    return %arg0, %c0_i32 : i32, i32
  }
  func.func @transform_2(%arg0: i32) -> (i32, i32) {
    %c0_i32 = arith.constant 0 : i32
    %c0_i32_0 = arith.constant 0 : i32
    return %c0_i32, %arg0 : i32, i32
  }
  func.func @transform_3(%arg0: i32) -> (i32, i32) {
    %c0_i32 = arith.constant 0 : i32
    %c0_i32_0 = arith.constant 0 : i32
    return %arg0, %c0_i32 : i32, i32
  }
  func.func @transform_4(%arg0: i32) -> (i32, i32) {
    %c0_i32 = arith.constant 0 : i32
    %c0_i32_0 = arith.constant 0 : i32
    %c0_i32_1 = arith.constant 0 : i32
    return %c0_i32, %c0_i32_0 : i32, i32
  }
  func.func @transform_5(%arg0: i32) -> (i32, i32) {
    %c0_i32 = arith.constant 0 : i32
    %c0_i32_0 = arith.constant 0 : i32
    %c0_i32_1 = arith.constant 0 : i32
    return %c0_i32, %c0_i32_0 : i32, i32
  }
  func.func @transform_6(%arg0: i32) -> (i32, i32) {
    %c0_i32 = arith.constant 0 : i32
    %c0_i32_0 = arith.constant 0 : i32
    %c0_i32_1 = arith.constant 0 : i32
    return %c0_i32, %c0_i32_0 : i32, i32
  }
  func.func @transform_7(%arg0: i32) -> (i32, i32) {
    %c0_i32 = arith.constant 0 : i32
    %c0_i32_0 = arith.constant 0 : i32
    %c0_i32_1 = arith.constant 0 : i32
    return %c0_i32, %c0_i32_0 : i32, i32
  }
  func.func @transform_8(%arg0: i32) -> (i32, i32) {
    %c0_i32 = arith.constant 0 : i32
    %c0_i32_0 = arith.constant 0 : i32
    %c0_i32_1 = arith.constant 0 : i32
    return %c0_i32, %c0_i32_0 : i32, i32
  }
  func.func @transform_9(%arg0: i32) -> (i32, i32) {
    %c0_i32 = arith.constant 0 : i32
    %c0_i32_0 = arith.constant 0 : i32
    %c0_i32_1 = arith.constant 0 : i32
    return %c0_i32, %c0_i32_0 : i32, i32
  }
  func.func @transform_10(%arg0: i32) -> (i32, i32) {
    %c0_i32 = arith.constant 0 : i32
    %c0_i32_0 = arith.constant 0 : i32
    %c0_i32_1 = arith.constant 0 : i32
    return %c0_i32, %c0_i32_0 : i32, i32
  }
  func.func @transform_11(%arg0: i32) -> (i32, i32) {
    %c0_i32 = arith.constant 0 : i32
    %c0_i32_0 = arith.constant 0 : i32
    %c0_i32_1 = arith.constant 0 : i32
    return %c0_i32, %c0_i32_0 : i32, i32
  }
  func.func @transform_12(%arg0: i32) -> (i32, i32) {
    %c0_i32 = arith.constant 0 : i32
    %c0_i32_0 = arith.constant 0 : i32
    %c0_i32_1 = arith.constant 0 : i32
    return %c0_i32, %c0_i32_0 : i32, i32
  }
  func.func @transform_13(%arg0: i32) -> (i32, i32) {
    %c0_i32 = arith.constant 0 : i32
    %c0_i32_0 = arith.constant 0 : i32
    %c0_i32_1 = arith.constant 0 : i32
    return %c0_i32, %c0_i32_0 : i32, i32
  }
  func.func @transform_14(%arg0: i32) -> (i32, i32) {
    %c0_i32 = arith.constant 0 : i32
    %c0_i32_0 = arith.constant 0 : i32
    %c0_i32_1 = arith.constant 0 : i32
    return %c0_i32, %c0_i32_0 : i32, i32
  }
  func.func @transform_15(%arg0: i32) -> (i32, i32) {
    %c0_i32 = arith.constant 0 : i32
    %c0_i32_0 = arith.constant 0 : i32
    %c0_i32_1 = arith.constant 0 : i32
    return %c0_i32, %c0_i32_0 : i32, i32
  }
  func.func @transform_16(%arg0: i32) -> (i32, i32) {
    %c0_i32 = arith.constant 0 : i32
    %c0_i32_0 = arith.constant 0 : i32
    %c0_i32_1 = arith.constant 0 : i32
    return %c0_i32, %c0_i32_0 : i32, i32
  }
  func.func @transform_17(%arg0: i32) -> (i32, i32) {
    %c0_i32 = arith.constant 0 : i32
    %c0_i32_0 = arith.constant 0 : i32
    %c0_i32_1 = arith.constant 0 : i32
    return %c0_i32, %c0_i32_0 : i32, i32
  }
  func.func @transform_18(%arg0: i32) -> (i32, i32) {
    %c0_i32 = arith.constant 0 : i32
    %c0_i32_0 = arith.constant 0 : i32
    %c0_i32_1 = arith.constant 0 : i32
    return %c0_i32, %c0_i32_0 : i32, i32
  }
  func.func @transform_19(%arg0: i32) -> (i32, i32) {
    %c0_i32 = arith.constant 0 : i32
    %c0_i32_0 = arith.constant 0 : i32
    %c0_i32_1 = arith.constant 0 : i32
    return %c0_i32, %c0_i32_0 : i32, i32
  }
  func.func @transform_20(%arg0: i32) -> (i32, i32) {
    %c0_i32 = arith.constant 0 : i32
    %c0_i32_0 = arith.constant 0 : i32
    %c0_i32_1 = arith.constant 0 : i32
    return %c0_i32, %c0_i32_0 : i32, i32
  }
}

</mosaic_0001>

<llo_original>
// kernel: gatmannp_forward.1
$region0: #{gatmannp_forward.1}
  #allocation0 [shape = 'u32[]', space=smem, size = 0x4, offset = 0x4, fixed_abs, tag = 'smem constant byte address 0x4 - core index']
  #allocation1 [shape = 'u32[144,128]{1,0:T(1,128)}', space=vmem, size = 0x12000, scoped, tag = 'internal scratch']
  #allocation2 [shape = 'f32[2,128]{1,0:T(2,128)}', space=vmem, size = 0x400, scoped, tag = 'scratch operand']
  #allocation3 [shape = 'f32[1,1]{1,0:T(1,128)S(6)}', space=smem, size = 0x200, scoped, tag = 'scoped memory for gatmannp_forward.1']
  #allocation4 [shape = 'f32[1,1]{1,0:T(1,128)S(6)}', space=smem, size = 0x200, scoped, tag = 'scoped memory for gatmannp_forward.1']
  %s0 = inlined_call_operand.vmem [shape: bf16[2,64], index: 0, kind: input, shape index: {}]
  %s1 = inlined_call_operand.vmem [shape: bf16[256,64], index: 1, kind: input, shape index: {}]
  %s2 = inlined_call_operand.vmem [shape: f32[1,256], index: 2, kind: input, shape index: {}]
  %s3 = inlined_call_operand.vmem [shape: bf16[256,128], index: 3, kind: input, shape index: {}]
  %s4 = inlined_call_operand.hbm [shape: f32[1,128], index: 4, kind: input, shape index: {}]
  %s5 = inlined_call_operand.vmem [shape: s32[1,16], index: 5, kind: input, shape index: {}]
  %s6 = inlined_call_operand.vmem [shape: s32[16,1], index: 6, kind: input, shape index: {}]
  %s7 = inlined_call_operand.vmem [shape: bf16[16,32], index: 7, kind: input, shape index: {}]
  %s8 = inlined_call_operand.hbm [shape: bf16[32,128], index: 8, kind: input, shape index: {}]
  %s9 = inlined_call_operand.hbm [shape: f32[1,128], index: 9, kind: input, shape index: {}]
  %s10 = inlined_call_operand.vmem [shape: bf16[128,128], index: 10, kind: input, shape index: {}]
  %s11 = inlined_call_operand.hbm [shape: f32[1,128], index: 11, kind: input, shape index: {}]
  %s12 = inlined_call_operand.hbm [shape: bf16[128,128], index: 12, kind: input, shape index: {}]
  %s13 = inlined_call_operand.hbm [shape: f32[1,128], index: 13, kind: input, shape index: {}]
  %s14 = inlined_call_operand.vmem [shape: f32[1,128], index: 14, kind: input, shape index: {}]
  %s15 = inlined_call_operand.<no memory space> [shape: f32[1,1], index: 15, kind: input, shape index: {}]
  %s16 = inlined_call_operand.hbm [shape: bf16[128,128], index: 16, kind: input, shape index: {}]
  %s17 = inlined_call_operand.hbm [shape: f32[1,128], index: 17, kind: input, shape index: {}]
  %s18 = inlined_call_operand.vmem [shape: f32[1,128], index: 18, kind: input, shape index: {}]
  %s19 = inlined_call_operand.<no memory space> [shape: f32[1,1], index: 19, kind: input, shape index: {}]
  %s20 = inlined_call_operand.vmem [shape: f32[2,1], index: 20, kind: output, shape index: {}]
  %s21 = sld [smem:[#allocation0]]
  $region153: #{gatmannp_forward.1} parent=0
    _
  %s23 = ssub.s32 1, %s21
  %s24 = scalar_select 0, %s23, %s21
  %25 = sst [smem:[#allocation3]] %s15
  %26 = sst [smem:[#allocation4]] %s19
  $region1: #{gatmannp_forward.1} parent=0
    #allocation5 [shape = 'u8[512]{0}', space=vmem, size = 0x400, scoped, tag = 'input window, operand 4, single buffered']
    #allocation6 [shape = 's32[2]{0}', space=sflag, size = 0x8, scoped, tag = 'scoped memory for gatmannp_forward.1']
    #allocation7 [shape = 'u8[8192]{0}', space=vmem, size = 0x2000, scoped, tag = 'input window, operand 8, single buffered']
    #allocation8 [shape = 's32[1]{0}', space=sflag, size = 0x4, scoped, tag = 'scoped memory for gatmannp_forward.1']
    #allocation9 [shape = 'u8[512]{0}', space=vmem, size = 0x400, scoped, tag = 'input window, operand 9, single buffered']
    #allocation10 [shape = 'u8[512]{0}', space=vmem, size = 0x400, scoped, tag = 'input window, operand 11, single buffered']
    #allocation11 [shape = 's32[1]{0}', space=sflag, size = 0x4, scoped, tag = 'scoped memory for gatmannp_forward.1']
    #allocation12 [shape = 'u8[32768]{0}', space=vmem, size = 0x8000, scoped, tag = 'input window, operand 12, single buffered']
    #allocation13 [shape = 'u8[512]{0}', space=vmem, size = 0x400, scoped, tag = 'input window, operand 13, single buffered']
    #allocation14 [shape = 's32[1]{0}', space=sflag, size = 0x4, scoped, tag = 'scoped memory for gatmannp_forward.1']
    #allocation15 [shape = 'u8[32768]{0}', space=vmem, size = 0x8000, scoped, tag = 'input window, operand 16, single buffered']
    #allocation16 [shape = 'u8[512]{0}', space=vmem, size = 0x400, scoped, tag = 'input window, operand 17, single buffered']
    #allocation17 [shape = 's32[1]{0}', space=sflag, size = 0x4, scoped, tag = 'scoped memory for gatmannp_forward.1']
    %27 = vsyncpa [#allocation6], 0
    %28 = vsyncpa [#allocation8], 0
    %29 = vsyncpa [#allocation11], 0
    %30 = vsyncpa [#allocation14], 0
    %31 = vsyncpa [#allocation17], 0
    loop: start=0, step=1, limit=4
    $region2: #{gatmannp_forward.1} parent=1 // loop_pre_header
      _
    $region3: #{gatmannp_forward.1} parent=1 // loop_header
      %s33 = sphi 0, %s37
      %p34 = scmp.ge.s32.totalorder %s33, 4
      %s41 = sphi 0, %s41
      %s43 = sphi 0, %s41
      %s44 = sphi 0, %s43
      %s58 = sphi 0, %s44
      %s64 = sphi 0, %s66
      %s67 = sphi 0, %s64
      %s68 = sphi 0, %s67
      %s84 = sphi 0, %s68
      %s90 = sphi 0, %s92
      %s93 = sphi 0, %s90
      %s94 = sphi 0, %s93
      %s110 = sphi 0, %s94
      %s116 = sphi 0, %s118
      %s119 = sphi 0, %s116
      %s120 = sphi 0, %s119
      %s136 = sphi 0, %s120
      %s140 = sphi 0, %s140
      %s142 = sphi 0, %s140
      %s143 = sphi 0, %s142
      %s157 = sphi 0, %s143
      %s161 = sphi 0, %s161
      %s163 = sphi 0, %s161
      %s164 = sphi 0, %s163
      %s178 = sphi 0, %s164
      %s182 = sphi 0, %s182
      %s184 = sphi 0, %s182
      %s185 = sphi 0, %s184
      %s199 = sphi 0, %s185
      %s203 = sphi 0, %s203
      %s205 = sphi 0, %s203
      %s206 = sphi 0, %s205
      %s220 = sphi 0, %s206
      %s224 = sphi 0, %s224
      %s226 = sphi 0, %s224
      %s227 = sphi 0, %s226
      %s241 = sphi 0, %s227
      %s245 = sphi 0, %s245
      %s247 = sphi 0, %s245
      %s248 = sphi 0, %s247
      %s262 = sphi 0, %s248
      %s266 = sphi 0, %s266
      %s268 = sphi 0, %s266
      %s269 = sphi 0, %s268
      %s283 = sphi 0, %s269
      %s287 = sphi 0, %s287
      %s289 = sphi 0, %s287
      %s290 = sphi 0, %s289
      %s304 = sphi 0, %s290
      %s308 = sphi 0, %s308
      %s310 = sphi 0, %s308
      %s311 = sphi 0, %s310
      %s325 = sphi 0, %s311
      %s329 = sphi 0, %s329
      %s331 = sphi 0, %s329
      %s332 = sphi 0, %s331
      %s346 = sphi 0, %s332
      %s350 = sphi 0, %s350
      %s352 = sphi 0, %s350
      %s353 = sphi 0, %s352
      %s367 = sphi 0, %s353
      %s371 = sphi 0, %s371
      %s373 = sphi 0, %s371
      %s374 = sphi 0, %s373
      %s388 = sphi 0, %s374
      %s392 = sphi 0, %s392
      %s394 = sphi 0, %s392
      %s395 = sphi 0, %s394
      %s409 = sphi 0, %s395
      %s413 = sphi 0, %s413
      %s415 = sphi 0, %s413
      %s416 = sphi 0, %s415
      %s430 = sphi 0, %s416
      %s434 = sphi 0, %s434
      %s436 = sphi 0, %s434
      %s437 = sphi 0, %s436
      %s451 = sphi 0, %s437
      %s455 = sphi 0, %s455
      %s457 = sphi 0, %s455
      %s458 = sphi 0, %s457
      %s472 = sphi 0, %s458
      %s476 = sphi 0, %s476
      %s478 = sphi 0, %s476
      %s479 = sphi 0, %s478
      %s493 = sphi 0, %s479
    $region4: #{gatmannp_forward.1} parent=1 // loop_header_branch
      %36 = sbr.rel (%p34) target = $region8
    $region5: #{gatmannp_forward.1} parent=1 // loop_body
      %s38 = ssub.s32 %s33, 1
      %s39 = ssub.s32 %s33, 2
      %s40 = sadd.s32 %s33, 1
      %s42 = sadd.s32 %s41, 1
      %p45 = scmp.eq.s32.totalorder %s33, 1
      %p46 = scmp.ne.s32.totalorder %s41, %s43
      %p47 = scmp.eq.s32.totalorder %s33, 0
      %p48 = por %p46, %p47
      %p49 = scmp.ne.s32.totalorder %s41, %s43
      %p50 = scmp.eq.s32.totalorder %s38, 1
      %p51 = por %p49, %p50
      %p52 = scmp.ne.s32.totalorder %s43, %s44
      %p53 = scmp.eq.s32.totalorder %s38, 0
      %p54 = por %p52, %p53
      %p55 = scmp.ne.s32.totalorder %s43, %s44
      %p56 = scmp.eq.s32.totalorder %s39, 1
      %p57 = por %p55, %p56
      %p59 = scmp.ne.s32.totalorder %s44, %s58
      %p60 = scmp.eq.s32.totalorder %s39, 0
      %p61 = por %p59, %p60
      %s62 = ssub.s32 %s33, %s40
      %p63 = scmp.eq.s32.totalorder %s62, 0
      %s65 = sadd.s32 %s64, 1
      %s66 = scalar_select %p63, %s64, %s65
      %p69 = pneg %p63
      %p70 = scmp.eq.s32.totalorder %s33, 1
      %p71 = por %p69, %p70
      %p72 = scmp.ne.s32.totalorder %s64, %s67
      %p73 = scmp.eq.s32.totalorder %s33, 0
      %p74 = por %p72, %p73
      %p75 = scmp.ne.s32.totalorder %s64, %s67
      %p76 = scmp.eq.s32.totalorder %s38, 1
      %p77 = por %p75, %p76
      %p78 = scmp.ne.s32.totalorder %s67, %s68
      %p79 = scmp.eq.s32.totalorder %s38, 0
      %p80 = por %p78, %p79
      %p81 = scmp.ne.s32.totalorder %s67, %s68
      %p82 = scmp.eq.s32.totalorder %s39, 1
      %p83 = por %p81, %p82
      %p85 = scmp.ne.s32.totalorder %s68, %s84
      %p86 = scmp.eq.s32.totalorder %s39, 0
      %p87 = por %p85, %p86
      %s88 = ssub.s32 %s33, %s40
      %p89 = scmp.eq.s32.totalorder %s88, 0
      %s91 = sadd.s32 %s90, 1
      %s92 = scalar_select %p89, %s90, %s91
      %p95 = pneg %p89
      %p96 = scmp.eq.s32.totalorder %s33, 1
      %p97 = por %p95, %p96
      %p98 = scmp.ne.s32.totalorder %s90, %s93
      %p99 = scmp.eq.s32.totalorder %s33, 0
      %p100 = por %p98, %p99
      %p101 = scmp.ne.s32.totalorder %s90, %s93
      %p102 = scmp.eq.s32.totalorder %s38, 1
      %p103 = por %p101, %p102
      %p104 = scmp.ne.s32.totalorder %s93, %s94
      %p105 = scmp.eq.s32.totalorder %s38, 0
      %p106 = por %p104, %p105
      %p107 = scmp.ne.s32.totalorder %s93, %s94
      %p108 = scmp.eq.s32.totalorder %s39, 1
      %p109 = por %p107, %p108
      %p111 = scmp.ne.s32.totalorder %s94, %s110
      %p112 = scmp.eq.s32.totalorder %s39, 0
      %p113 = por %p111, %p112
      %s114 = ssub.s32 %s33, %s40
      %p115 = scmp.eq.s32.totalorder %s114, 0
      %s117 = sadd.s32 %s116, 1
      %s118 = scalar_select %p115, %s116, %s117
      %p121 = pneg %p115
      %p122 = scmp.eq.s32.totalorder %s33, 1
      %p123 = por %p121, %p122
      %p124 = scmp.ne.s32.totalorder %s116, %s119
      %p125 = scmp.eq.s32.totalorder %s33, 0
      %p126 = por %p124, %p125
      %p127 = scmp.ne.s32.totalorder %s116, %s119
      %p128 = scmp.eq.s32.totalorder %s38, 1
      %p129 = por %p127, %p128
      %p130 = scmp.ne.s32.totalorder %s119, %s120
      %p131 = scmp.eq.s32.totalorder %s38, 0
      %p132 = por %p130, %p131
      %p133 = scmp.ne.s32.totalorder %s119, %s120
      %p134 = scmp.eq.s32.totalorder %s39, 1
      %p135 = por %p133, %p134
      %p137 = scmp.ne.s32.totalorder %s120, %s136
      %p138 = scmp.eq.s32.totalorder %s39, 0
      %p139 = por %p137, %p138
      %s141 = sadd.s32 %s140, 1
      %p144 = scmp.eq.s32.totalorder %s33, 1
      %p145 = scmp.ne.s32.totalorder %s140, %s142
      %p146 = scmp.eq.s32.totalorder %s33, 0
      %p147 = por %p145, %p146
      %p148 = scmp.ne.s32.totalorder %s140, %s142
      %p149 = scmp.eq.s32.totalorder %s38, 1
      %p150 = por %p148, %p149
      %p151 = scmp.ne.s32.totalorder %s142, %s143
      %p152 = scmp.eq.s32.totalorder %s38, 0
      %p153 = por %p151, %p152
      %p154 = scmp.ne.s32.totalorder %s142, %s143
      %p155 = scmp.eq.s32.totalorder %s39, 1
      %p156 = por %p154, %p155
      %p158 = scmp.ne.s32.totalorder %s143, %s157
      %p159 = scmp.eq.s32.totalorder %s39, 0
      %p160 = por %p158, %p159
      %s162 = sadd.s32 %s161, 1
      %p165 = scmp.eq.s32.totalorder %s33, 1
      %p166 = scmp.ne.s32.totalorder %s161, %s163
      %p167 = scmp.eq.s32.totalorder %s33, 0
      %p168 = por %p166, %p167
      %p169 = scmp.ne.s32.totalorder %s161, %s163
      %p170 = scmp.eq.s32.totalorder %s38, 1
      %p171 = por %p169, %p170
      %p172 = scmp.ne.s32.totalorder %s163, %s164
      %p173 = scmp.eq.s32.totalorder %s38, 0
      %p174 = por %p172, %p173
      %p175 = scmp.ne.s32.totalorder %s163, %s164
      %p176 = scmp.eq.s32.totalorder %s39, 1
      %p177 = por %p175, %p176
      %p179 = scmp.ne.s32.totalorder %s164, %s178
      %p180 = scmp.eq.s32.totalorder %s39, 0
      %p181 = por %p179, %p180
      %s183 = sadd.s32 %s182, 1
      %p186 = scmp.eq.s32.totalorder %s33, 1
      %p187 = scmp.ne.s32.totalorder %s182, %s184
      %p188 = scmp.eq.s32.totalorder %s33, 0
      %p189 = por %p187, %p188
      %p190 = scmp.ne.s32.totalorder %s182, %s184
      %p191 = scmp.eq.s32.totalorder %s38, 1
      %p192 = por %p190, %p191
      %p193 = scmp.ne.s32.totalorder %s184, %s185
      %p194 = scmp.eq.s32.totalorder %s38, 0
      %p195 = por %p193, %p194
      %p196 = scmp.ne.s32.totalorder %s184, %s185
      %p197 = scmp.eq.s32.totalorder %s39, 1
      %p198 = por %p196, %p197
      %p200 = scmp.ne.s32.totalorder %s185, %s199
      %p201 = scmp.eq.s32.totalorder %s39, 0
      %p202 = por %p200, %p201
      %s204 = sadd.s32 %s203, 1
      %p207 = scmp.eq.s32.totalorder %s33, 1
      %p208 = scmp.ne.s32.totalorder %s203, %s205
      %p209 = scmp.eq.s32.totalorder %s33, 0
      %p210 = por %p208, %p209
      %p211 = scmp.ne.s32.totalorder %s203, %s205
      %p212 = scmp.eq.s32.totalorder %s38, 1
      %p213 = por %p211, %p212
      %p214 = scmp.ne.s32.totalorder %s205, %s206
      %p215 = scmp.eq.s32.totalorder %s38, 0
      %p216 = por %p214, %p215
      %p217 = scmp.ne.s32.totalorder %s205, %s206
      %p218 = scmp.eq.s32.totalorder %s39, 1
      %p219 = por %p217, %p218
      %p221 = scmp.ne.s32.totalorder %s206, %s220
      %p222 = scmp.eq.s32.totalorder %s39, 0
      %p223 = por %p221, %p222
      %s225 = sadd.s32 %s224, 1
      %p228 = scmp.eq.s32.totalorder %s33, 1
      %p229 = scmp.ne.s32.totalorder %s224, %s226
      %p230 = scmp.eq.s32.totalorder %s33, 0
      %p231 = por %p229, %p230
      %p232 = scmp.ne.s32.totalorder %s224, %s226
      %p233 = scmp.eq.s32.totalorder %s38, 1
      %p234 = por %p232, %p233
      %p235 = scmp.ne.s32.totalorder %s226, %s227
      %p236 = scmp.eq.s32.totalorder %s38, 0
      %p237 = por %p235, %p236
      %p238 = scmp.ne.s32.totalorder %s226, %s227
      %p239 = scmp.eq.s32.totalorder %s39, 1
      %p240 = por %p238, %p239
      %p242 = scmp.ne.s32.totalorder %s227, %s241
      %p243 = scmp.eq.s32.totalorder %s39, 0
      %p244 = por %p242, %p243
      %s246 = sadd.s32 %s245, 1
      %p249 = scmp.eq.s32.totalorder %s33, 1
      %p250 = scmp.ne.s32.totalorder %s245, %s247
      %p251 = scmp.eq.s32.totalorder %s33, 0
      %p252 = por %p250, %p251
      %p253 = scmp.ne.s32.totalorder %s245, %s247
      %p254 = scmp.eq.s32.totalorder %s38, 1
      %p255 = por %p253, %p254
      %p256 = scmp.ne.s32.totalorder %s247, %s248
      %p257 = scmp.eq.s32.totalorder %s38, 0
      %p258 = por %p256, %p257
      %p259 = scmp.ne.s32.totalorder %s247, %s248
      %p260 = scmp.eq.s32.totalorder %s39, 1
      %p261 = por %p259, %p260
      %p263 = scmp.ne.s32.totalorder %s248, %s262
      %p264 = scmp.eq.s32.totalorder %s39, 0
      %p265 = por %p263, %p264
      %s267 = sadd.s32 %s266, 1
      %p270 = scmp.eq.s32.totalorder %s33, 1
      %p271 = scmp.ne.s32.totalorder %s266, %s268
      %p272 = scmp.eq.s32.totalorder %s33, 0
      %p273 = por %p271, %p272
      %p274 = scmp.ne.s32.totalorder %s266, %s268
      %p275 = scmp.eq.s32.totalorder %s38, 1
      %p276 = por %p274, %p275
      %p277 = scmp.ne.s32.totalorder %s268, %s269
      %p278 = scmp.eq.s32.totalorder %s38, 0
      %p279 = por %p277, %p278
      %p280 = scmp.ne.s32.totalorder %s268, %s269
      %p281 = scmp.eq.s32.totalorder %s39, 1
      %p282 = por %p280, %p281
      %p284 = scmp.ne.s32.totalorder %s269, %s283
      %p285 = scmp.eq.s32.totalorder %s39, 0
      %p286 = por %p284, %p285
      %s288 = sadd.s32 %s287, 1
      %p291 = scmp.eq.s32.totalorder %s33, 1
      %p292 = scmp.ne.s32.totalorder %s287, %s289
      %p293 = scmp.eq.s32.totalorder %s33, 0
      %p294 = por %p292, %p293
      %p295 = scmp.ne.s32.totalorder %s287, %s289
      %p296 = scmp.eq.s32.totalorder %s38, 1
      %p297 = por %p295, %p296
      %p298 = scmp.ne.s32.totalorder %s289, %s290
      %p299 = scmp.eq.s32.totalorder %s38, 0
      %p300 = por %p298, %p299
      %p301 = scmp.ne.s32.totalorder %s289, %s290
      %p302 = scmp.eq.s32.totalorder %s39, 1
      %p303 = por %p301, %p302
      %p305 = scmp.ne.s32.totalorder %s290, %s304
      %p306 = scmp.eq.s32.totalorder %s39, 0
      %p307 = por %p305, %p306
      %s309 = sadd.s32 %s308, 1
      %p312 = scmp.eq.s32.totalorder %s33, 1
      %p313 = scmp.ne.s32.totalorder %s308, %s310
      %p314 = scmp.eq.s32.totalorder %s33, 0
      %p315 = por %p313, %p314
      %p316 = scmp.ne.s32.totalorder %s308, %s310
      %p317 = scmp.eq.s32.totalorder %s38, 1
      %p318 = por %p316, %p317
      %p319 = scmp.ne.s32.totalorder %s310, %s311
      %p320 = scmp.eq.s32.totalorder %s38, 0
      %p321 = por %p319, %p320
      %p322 = scmp.ne.s32.totalorder %s310, %s311
      %p323 = scmp.eq.s32.totalorder %s39, 1
      %p324 = por %p322, %p323
      %p326 = scmp.ne.s32.totalorder %s311, %s325
      %p327 = scmp.eq.s32.totalorder %s39, 0
      %p328 = por %p326, %p327
      %s330 = sadd.s32 %s329, 1
      %p333 = scmp.eq.s32.totalorder %s33, 1
      %p334 = scmp.ne.s32.totalorder %s329, %s331
      %p335 = scmp.eq.s32.totalorder %s33, 0
      %p336 = por %p334, %p335
      %p337 = scmp.ne.s32.totalorder %s329, %s331
      %p338 = scmp.eq.s32.totalorder %s38, 1
      %p339 = por %p337, %p338
      %p340 = scmp.ne.s32.totalorder %s331, %s332
      %p341 = scmp.eq.s32.totalorder %s38, 0
      %p342 = por %p340, %p341
      %p343 = scmp.ne.s32.totalorder %s331, %s332
      %p344 = scmp.eq.s32.totalorder %s39, 1
      %p345 = por %p343, %p344
      %p347 = scmp.ne.s32.totalorder %s332, %s346
      %p348 = scmp.eq.s32.totalorder %s39, 0
      %p349 = por %p347, %p348
      %s351 = sadd.s32 %s350, 1
      %p354 = scmp.eq.s32.totalorder %s33, 1
      %p355 = scmp.ne.s32.totalorder %s350, %s352
      %p356 = scmp.eq.s32.totalorder %s33, 0
      %p357 = por %p355, %p356
      %p358 = scmp.ne.s32.totalorder %s350, %s352
      %p359 = scmp.eq.s32.totalorder %s38, 1
      %p360 = por %p358, %p359
      %p361 = scmp.ne.s32.totalorder %s352, %s353
      %p362 = scmp.eq.s32.totalorder %s38, 0
      %p363 = por %p361, %p362
      %p364 = scmp.ne.s32.totalorder %s352, %s353
      %p365 = scmp.eq.s32.totalorder %s39, 1
      %p366 = por %p364, %p365
      %p368 = scmp.ne.s32.totalorder %s353, %s367
      %p369 = scmp.eq.s32.totalorder %s39, 0
      %p370 = por %p368, %p369
      %s372 = sadd.s32 %s371, 1
      %p375 = scmp.eq.s32.totalorder %s33, 1
      %p376 = scmp.ne.s32.totalorder %s371, %s373
      %p377 = scmp.eq.s32.totalorder %s33, 0
      %p378 = por %p376, %p377
      %p379 = scmp.ne.s32.totalorder %s371, %s373
      %p380 = scmp.eq.s32.totalorder %s38, 1
      %p381 = por %p379, %p380
      %p382 = scmp.ne.s32.totalorder %s373, %s374
      %p383 = scmp.eq.s32.totalorder %s38, 0
      %p384 = por %p382, %p383
      %p385 = scmp.ne.s32.totalorder %s373, %s374
      %p386 = scmp.eq.s32.totalorder %s39, 1
      %p387 = por %p385, %p386
      %p389 = scmp.ne.s32.totalorder %s374, %s388
      %p390 = scmp.eq.s32.totalorder %s39, 0
      %p391 = por %p389, %p390
      %s393 = sadd.s32 %s392, 1
      %p396 = scmp.eq.s32.totalorder %s33, 1
      %p397 = scmp.ne.s32.totalorder %s392, %s394
      %p398 = scmp.eq.s32.totalorder %s33, 0
      %p399 = por %p397, %p398
      %p400 = scmp.ne.s32.totalorder %s392, %s394
      %p401 = scmp.eq.s32.totalorder %s38, 1
      %p402 = por %p400, %p401
      %p403 = scmp.ne.s32.totalorder %s394, %s395
      %p404 = scmp.eq.s32.totalorder %s38, 0
      %p405 = por %p403, %p404
      %p406 = scmp.ne.s32.totalorder %s394, %s395
      %p407 = scmp.eq.s32.totalorder %s39, 1
      %p408 = por %p406, %p407
      %p410 = scmp.ne.s32.totalorder %s395, %s409
      %p411 = scmp.eq.s32.totalorder %s39, 0
      %p412 = por %p410, %p411
      %s414 = sadd.s32 %s413, 1
      %p417 = scmp.eq.s32.totalorder %s33, 1
      %p418 = scmp.ne.s32.totalorder %s413, %s415
      %p419 = scmp.eq.s32.totalorder %s33, 0
      %p420 = por %p418, %p419
      %p421 = scmp.ne.s32.totalorder %s413, %s415
      %p422 = scmp.eq.s32.totalorder %s38, 1
      %p423 = por %p421, %p422
      %p424 = scmp.ne.s32.totalorder %s415, %s416
      %p425 = scmp.eq.s32.totalorder %s38, 0
      %p426 = por %p424, %p425
      %p427 = scmp.ne.s32.totalorder %s415, %s416
      %p428 = scmp.eq.s32.totalorder %s39, 1
      %p429 = por %p427, %p428
      %p431 = scmp.ne.s32.totalorder %s416, %s430
      %p432 = scmp.eq.s32.totalorder %s39, 0
      %p433 = por %p431, %p432
      %s435 = sadd.s32 %s434, 1
      %p438 = scmp.eq.s32.totalorder %s33, 1
      %p439 = scmp.ne.s32.totalorder %s434, %s436
      %p440 = scmp.eq.s32.totalorder %s33, 0
      %p441 = por %p439, %p440
      %p442 = scmp.ne.s32.totalorder %s434, %s436
      %p443 = scmp.eq.s32.totalorder %s38, 1
      %p444 = por %p442, %p443
      %p445 = scmp.ne.s32.totalorder %s436, %s437
      %p446 = scmp.eq.s32.totalorder %s38, 0
      %p447 = por %p445, %p446
      %p448 = scmp.ne.s32.totalorder %s436, %s437
      %p449 = scmp.eq.s32.totalorder %s39, 1
      %p450 = por %p448, %p449
      %p452 = scmp.ne.s32.totalorder %s437, %s451
      %p453 = scmp.eq.s32.totalorder %s39, 0
      %p454 = por %p452, %p453
      %s456 = sadd.s32 %s455, 1
      %p459 = scmp.eq.s32.totalorder %s33, 1
      %p460 = scmp.ne.s32.totalorder %s455, %s457
      %p461 = scmp.eq.s32.totalorder %s33, 0
      %p462 = por %p460, %p461
      %p463 = scmp.ne.s32.totalorder %s455, %s457
      %p464 = scmp.eq.s32.totalorder %s38, 1
      %p465 = por %p463, %p464
      %p466 = scmp.ne.s32.totalorder %s457, %s458
      %p467 = scmp.eq.s32.totalorder %s38, 0
      %p468 = por %p466, %p467
      %p469 = scmp.ne.s32.totalorder %s457, %s458
      %p470 = scmp.eq.s32.totalorder %s39, 1
      %p471 = por %p469, %p470
      %p473 = scmp.ne.s32.totalorder %s458, %s472
      %p474 = scmp.eq.s32.totalorder %s39, 0
      %p475 = por %p473, %p474
      %s477 = sadd.s32 %s476, 1
      %p480 = scmp.eq.s32.totalorder %s33, 1
      %p481 = scmp.ne.s32.totalorder %s476, %s478
      %p482 = scmp.eq.s32.totalorder %s33, 0
      %p483 = por %p481, %p482
      %p484 = scmp.ne.s32.totalorder %s476, %s478
      %p485 = scmp.eq.s32.totalorder %s38, 1
      %p486 = por %p484, %p485
      %p487 = scmp.ne.s32.totalorder %s478, %s479
      %p488 = scmp.eq.s32.totalorder %s38, 0
      %p489 = por %p487, %p488
      %p490 = scmp.ne.s32.totalorder %s478, %s479
      %p491 = scmp.eq.s32.totalorder %s39, 1
      %p492 = por %p490, %p491
      %p494 = scmp.ne.s32.totalorder %s479, %s493
      %p495 = scmp.eq.s32.totalorder %s39, 0
      %p496 = por %p494, %p495
      %p497 = scmp.le.s32.totalorder 1, %s33
      %p498 = scmp.lt.s32.totalorder %s33, 3
      %p499 = pnand %p497, %p498
      %p500 = pneg %p499
      // Predicated region
      $region9: #{gatmannp_forward.1} parent=5 // pred_check
        _
      $region10: #{gatmannp_forward.1} parent=5 // pred_check_branch
        %502 = sbr.rel (%p499) target = $region12
      $region11: #{gatmannp_forward.1} parent=5 // pred_region
        %s503 = ssub.s32 %s33, 1
        // Predicated region
        $region13: #{gatmannp_forward.1} parent=11 // pred_check
          %p504 = pneg %p54
        $region14: #{gatmannp_forward.1} parent=11 // pred_check_branch
          %506 = sbr.rel (%p504) target = $region16
        $region15: #{gatmannp_forward.1} parent=11 // pred_region
          _
        $region16: #{gatmannp_forward.1} parent=11 // pred_fallthru
          _
        // Predicated region
        $region17: #{gatmannp_forward.1} parent=11 // pred_check
          %p507 = pneg %p153
        $region18: #{gatmannp_forward.1} parent=11 // pred_check_branch
          %509 = sbr.rel (%p507) target = $region20
        $region19: #{gatmannp_forward.1} parent=11 // pred_region
          %s511 = ssub.s32 16, 16
          %512 = vsyncadd [#allocation6], %s511
          %s514 = sshll.u32 [#allocation5], 4
          %s515 = int_to_ptr.vmem [resolvable:$true] %s514
          %517 = dma.hbm_to_vmem [thread:$0]  %s4, 16, %s515, [#allocation6]
        $region20: #{gatmannp_forward.1} parent=11 // pred_fallthru
          _
        // Predicated region
        $region21: #{gatmannp_forward.1} parent=11 // pred_check
          %p518 = pneg %p174
        $region22: #{gatmannp_forward.1} parent=11 // pred_check_branch
          %520 = sbr.rel (%p518) target = $region24
        $region23: #{gatmannp_forward.1} parent=11 // pred_region
          _
        $region24: #{gatmannp_forward.1} parent=11 // pred_fallthru
          _
        // Predicated region
        $region25: #{gatmannp_forward.1} parent=11 // pred_check
          %p521 = pneg %p195
        $region26: #{gatmannp_forward.1} parent=11 // pred_check_branch
          %523 = sbr.rel (%p521) target = $region28
        $region27: #{gatmannp_forward.1} parent=11 // pred_region
          _
        $region28: #{gatmannp_forward.1} parent=11 // pred_fallthru
          _
        // Predicated region
        $region29: #{gatmannp_forward.1} parent=11 // pred_check
          %p524 = pneg %p216
        $region30: #{gatmannp_forward.1} parent=11 // pred_check_branch
          %526 = sbr.rel (%p524) target = $region32
        $region31: #{gatmannp_forward.1} parent=11 // pred_region
          _
        $region32: #{gatmannp_forward.1} parent=11 // pred_fallthru
          _
        // Predicated region
        $region33: #{gatmannp_forward.1} parent=11 // pred_check
          %p527 = pneg %p237
        $region34: #{gatmannp_forward.1} parent=11 // pred_check_branch
          %529 = sbr.rel (%p527) target = $region36
        $region35: #{gatmannp_forward.1} parent=11 // pred_region
          %s531 = ssub.s32 256, 256
          %532 = vsyncadd [#allocation8], %s531
          %s533 = sshll.u32 [#allocation7], 4
          %s534 = int_to_ptr.vmem [resolvable:$true] %s533
          %539 = dma.hbm_to_vmem [thread:$0]  %s8, 256, %s534, [#allocation8], 64, 64, 4
        $region36: #{gatmannp_forward.1} parent=11 // pred_fallthru
          _
        // Predicated region
        $region37: #{gatmannp_forward.1} parent=11 // pred_check
          %p540 = pneg %p258
        $region38: #{gatmannp_forward.1} parent=11 // pred_check_branch
          %542 = sbr.rel (%p540) target = $region40
        $region39: #{gatmannp_forward.1} parent=11 // pred_region
          %s544 = ssub.s32 16, 16
          %545 = vsyncadd [#allocation8], %s544
          %s547 = sshll.u32 [#allocation9], 4
          %s548 = int_to_ptr.vmem [resolvable:$true] %s547
          %550 = dma.hbm_to_vmem [thread:$0]  %s9, 16, %s548, [#allocation8]
        $region40: #{gatmannp_forward.1} parent=11 // pred_fallthru
          _
        // Predicated region
        $region41: #{gatmannp_forward.1} parent=11 // pred_check
          %p551 = pneg %p279
        $region42: #{gatmannp_forward.1} parent=11 // pred_check_branch
          %553 = sbr.rel (%p551) target = $region44
        $region43: #{gatmannp_forward.1} parent=11 // pred_region
          _
        $region44: #{gatmannp_forward.1} parent=11 // pred_fallthru
          _
        // Predicated region
        $region45: #{gatmannp_forward.1} parent=11 // pred_check
          %p554 = pneg %p300
        $region46: #{gatmannp_forward.1} parent=11 // pred_check_branch
          %556 = sbr.rel (%p554) target = $region48
        $region47: #{gatmannp_forward.1} parent=11 // pred_region
          %s558 = ssub.s32 16, 16
          %559 = vsyncadd [#allocation11], %s558
          %s561 = sshll.u32 [#allocation10], 4
          %s562 = int_to_ptr.vmem [resolvable:$true] %s561
          %564 = dma.hbm_to_vmem [thread:$0]  %s11, 16, %s562, [#allocation11]
        $region48: #{gatmannp_forward.1} parent=11 // pred_fallthru
          _
        // Predicated region
        $region49: #{gatmannp_forward.1} parent=11 // pred_check
          %p565 = pneg %p321
        $region50: #{gatmannp_forward.1} parent=11 // pred_check_branch
          %567 = sbr.rel (%p565) target = $region52
        $region51: #{gatmannp_forward.1} parent=11 // pred_region
          %s569 = ssub.s32 1024, 1024
          %570 = vsyncadd [#allocation11], %s569
          %s571 = sshll.u32 [#allocation12], 4
          %s572 = int_to_ptr.vmem [resolvable:$true] %s571
          %577 = dma.hbm_to_vmem [thread:$0]  %s12, 1024, %s572, [#allocation11], 64, 64, 4
        $region52: #{gatmannp_forward.1} parent=11 // pred_fallthru
          _
        // Predicated region
        $region53: #{gatmannp_forward.1} parent=11 // pred_check
          %p578 = pneg %p342
        $region54: #{gatmannp_forward.1} parent=11 // pred_check_branch
          %580 = sbr.rel (%p578) target = $region56
        $region55: #{gatmannp_forward.1} parent=11 // pred_region
          %s582 = ssub.s32 16, 16
          %583 = vsyncadd [#allocation14], %s582
          %s585 = sshll.u32 [#allocation13], 4
          %s586 = int_to_ptr.vmem [resolvable:$true] %s585
          %588 = dma.hbm_to_vmem [thread:$0]  %s13, 16, %s586, [#allocation14]
        $region56: #{gatmannp_forward.1} parent=11 // pred_fallthru
          _
        // Predicated region
        $region57: #{gatmannp_forward.1} parent=11 // pred_check
          %p589 = pneg %p363
        $region58: #{gatmannp_forward.1} parent=11 // pred_check_branch
          %591 = sbr.rel (%p589) target = $region60
        $region59: #{gatmannp_forward.1} parent=11 // pred_region
          _
        $region60: #{gatmannp_forward.1} parent=11 // pred_fallthru
          _
        // Predicated region
        $region61: #{gatmannp_forward.1} parent=11 // pred_check
          %p592 = pneg %p384
        $region62: #{gatmannp_forward.1} parent=11 // pred_check_branch
          %594 = sbr.rel (%p592) target = $region64
        $region63: #{gatmannp_forward.1} parent=11 // pred_region
          _
        $region64: #{gatmannp_forward.1} parent=11 // pred_fallthru
          _
        // Predicated region
        $region65: #{gatmannp_forward.1} parent=11 // pred_check
          %p595 = pneg %p405
        $region66: #{gatmannp_forward.1} parent=11 // pred_check_branch
          %597 = sbr.rel (%p595) target = $region68
        $region67: #{gatmannp_forward.1} parent=11 // pred_region
          %s599 = ssub.s32 1024, 1024
          %600 = vsyncadd [#allocation14], %s599
          %s601 = sshll.u32 [#allocation15], 4
          %s602 = int_to_ptr.vmem [resolvable:$true] %s601
          %607 = dma.hbm_to_vmem [thread:$0]  %s16, 1024, %s602, [#allocation14], 64, 64, 4
        $region68: #{gatmannp_forward.1} parent=11 // pred_fallthru
          _
        // Predicated region
        $region69: #{gatmannp_forward.1} parent=11 // pred_check
          %p608 = pneg %p426
        $region70: #{gatmannp_forward.1} parent=11 // pred_check_branch
          %610 = sbr.rel (%p608) target = $region72
        $region71: #{gatmannp_forward.1} parent=11 // pred_region
          %s612 = ssub.s32 16, 16
          %613 = vsyncadd [#allocation17], %s612
          %s615 = sshll.u32 [#allocation16], 4
          %s616 = int_to_ptr.vmem [resolvable:$true] %s615
          %618 = dma.hbm_to_vmem [thread:$0]  %s17, 16, %s616, [#allocation17]
        $region72: #{gatmannp_forward.1} parent=11 // pred_fallthru
          _
        // Predicated region
        $region73: #{gatmannp_forward.1} parent=11 // pred_check
          %p619 = pneg %p447
        $region74: #{gatmannp_forward.1} parent=11 // pred_check_branch
          %621 = sbr.rel (%p619) target = $region76
        $region75: #{gatmannp_forward.1} parent=11 // pred_region
          _
        $region76: #{gatmannp_forward.1} parent=11 // pred_fallthru
          _
        // Predicated region
        $region77: #{gatmannp_forward.1} parent=11 // pred_check
          %p622 = pneg %p468
        $region78: #{gatmannp_forward.1} parent=11 // pred_check_branch
          %624 = sbr.rel (%p622) target = $region80
        $region79: #{gatmannp_forward.1} parent=11 // pred_region
          _
        $region80: #{gatmannp_forward.1} parent=11 // pred_fallthru
          _
      $region12: #{gatmannp_forward.1} parent=5 // pred_fallthru
        _
      %p625 = scmp.lt.s32.totalorder %s33, 2
      // Predicated region
      $region81: #{gatmannp_forward.1} parent=5 // pred_check
        %p626 = pneg %p625
      $region82: #{gatmannp_forward.1} parent=5 // pred_check_branch
        %628 = sbr.rel (%p626) target = $region84
      $region83: #{gatmannp_forward.1} parent=5 // pred_region
        // Predicated region
        $region85: #{gatmannp_forward.1} parent=83 // pred_check
          %p629 = pneg %p74
        $region86: #{gatmannp_forward.1} parent=83 // pred_check_branch
          %631 = sbr.rel (%p629) target = $region88
        $region87: #{gatmannp_forward.1} parent=83 // pred_region
          %s632 = smul.u32 16, %s33
          %p633 = scmp.lt.s32.totalorder %s632, 31
          %s634 = scalar_select %p633, %s632, 31
          %s635 = smul.addr %s634, 4
          %s636 = scalar_lea.vmem %s1, %s635
          %s637 = smul.u32 16, %s33
        $region88: #{gatmannp_forward.1} parent=83 // pred_fallthru
          _
        // Predicated region
        $region89: #{gatmannp_forward.1} parent=83 // pred_check
          %p638 = pneg %p100
        $region90: #{gatmannp_forward.1} parent=83 // pred_check_branch
          %640 = sbr.rel (%p638) target = $region92
        $region91: #{gatmannp_forward.1} parent=83 // pred_region
          %p641 = scmp.lt.s32.totalorder %s33, 1
          %s642 = scalar_select %p641, %s33, 1
          %s643 = scalar_lea.vmem %s2, %s642
        $region92: #{gatmannp_forward.1} parent=83 // pred_fallthru
          _
        // Predicated region
        $region93: #{gatmannp_forward.1} parent=83 // pred_check
          %p644 = pneg %p126
        $region94: #{gatmannp_forward.1} parent=83 // pred_check_branch
          %646 = sbr.rel (%p644) target = $region96
        $region95: #{gatmannp_forward.1} parent=83 // pred_region
          %s647 = smul.u32 16, %s33
          %p648 = scmp.lt.s32.totalorder %s647, 31
          %s649 = scalar_select %p648, %s647, 31
          %s650 = smul.addr %s649, 4
          %s651 = scalar_lea.vmem %s3, %s650
          %s652 = smul.u32 16, %s33
        $region96: #{gatmannp_forward.1} parent=83 // pred_fallthru
          _
      $region84: #{gatmannp_forward.1} parent=5 // pred_fallthru
        _
      %p653 = scmp.le.s32.totalorder 1, %s33
      %p654 = scmp.lt.s32.totalorder %s33, 3
      %p655 = pnand %p653, %p654
      %p656 = pneg %p655
      // Predicated region
      $region97: #{gatmannp_forward.1} parent=5 // pred_check
        _
      $region98: #{gatmannp_forward.1} parent=5 // pred_check_branch
        %658 = sbr.rel (%p655) target = $region100
      $region99: #{gatmannp_forward.1} parent=5 // pred_region
        %s659 = ssub.s32 %s33, 1
        // Predicated region
        $region101: #{gatmannp_forward.1} parent=99 // pred_check
          %p660 = pneg %p153
        $region102: #{gatmannp_forward.1} parent=99 // pred_check_branch
          %662 = sbr.rel (%p660) target = $region104
        $region103: #{gatmannp_forward.1} parent=99 // pred_region
          %663 = dma.done [#allocation6], 16
        $region104: #{gatmannp_forward.1} parent=99 // pred_fallthru
          _
        // Predicated region
        $region105: #{gatmannp_forward.1} parent=99 // pred_check
          %p664 = pneg %p237
        $region106: #{gatmannp_forward.1} parent=99 // pred_check_branch
          %666 = sbr.rel (%p664) target = $region108
        $region107: #{gatmannp_forward.1} parent=99 // pred_region
          %667 = dma.done [#allocation8], 256
        $region108: #{gatmannp_forward.1} parent=99 // pred_fallthru
          _
        // Predicated region
        $region109: #{gatmannp_forward.1} parent=99 // pred_check
          %p668 = pneg %p258
        $region110: #{gatmannp_forward.1} parent=99 // pred_check_branch
          %670 = sbr.rel (%p668) target = $region112
        $region111: #{gatmannp_forward.1} parent=99 // pred_region
          %671 = dma.done [#allocation8], 16
        $region112: #{gatmannp_forward.1} parent=99 // pred_fallthru
          _
        // Predicated region
        $region113: #{gatmannp_forward.1} parent=99 // pred_check
          %p672 = pneg %p300
        $region114: #{gatmannp_forward.1} parent=99 // pred_check_branch
          %674 = sbr.rel (%p672) target = $region116
        $region115: #{gatmannp_forward.1} parent=99 // pred_region
          %675 = dma.done [#allocation11], 16
        $region116: #{gatmannp_forward.1} parent=99 // pred_fallthru
          _
        // Predicated region
        $region117: #{gatmannp_forward.1} parent=99 // pred_check
          %p676 = pneg %p321
        $region118: #{gatmannp_forward.1} parent=99 // pred_check_branch
          %678 = sbr.rel (%p676) target = $region120
        $region119: #{gatmannp_forward.1} parent=99 // pred_region
          %679 = dma.done [#allocation11], 1024
        $region120: #{gatmannp_forward.1} parent=99 // pred_fallthru
          _
        // Predicated region
        $region121: #{gatmannp_forward.1} parent=99 // pred_check
          %p680 = pneg %p342
        $region122: #{gatmannp_forward.1} parent=99 // pred_check_branch
          %682 = sbr.rel (%p680) target = $region124
        $region123: #{gatmannp_forward.1} parent=99 // pred_region
          %683 = dma.done [#allocation14], 16
        $region124: #{gatmannp_forward.1} parent=99 // pred_fallthru
          _
        // Predicated region
        $region125: #{gatmannp_forward.1} parent=99 // pred_check
          %p684 = pneg %p405
        $region126: #{gatmannp_forward.1} parent=99 // pred_check_branch
          %686 = sbr.rel (%p684) target = $region128
        $region127: #{gatmannp_forward.1} parent=99 // pred_region
          %687 = dma.done [#allocation14], 1024
        $region128: #{gatmannp_forward.1} parent=99 // pred_fallthru
          _
        // Predicated region
        $region129: #{gatmannp_forward.1} parent=99 // pred_check
          %p688 = pneg %p426
        $region130: #{gatmannp_forward.1} parent=99 // pred_check_branch
          %690 = sbr.rel (%p688) target = $region132
        $region131: #{gatmannp_forward.1} parent=99 // pred_region
          %691 = dma.done [#allocation17], 16
        $region132: #{gatmannp_forward.1} parent=99 // pred_fallthru
          _
        %p692 = pneg %p54
        %p693 = pneg %p51
        %s694 = smul.u32 16, %s38
        %p695 = scmp.lt.s32.totalorder %s694, 31
        %s696 = scalar_select %p695, %s694, 31
        %s697 = smul.addr %s696, 4
        %s698 = scalar_lea.vmem %s1, %s697
        %p699 = pneg %p80
        %p700 = pneg %p77
        %p701 = scmp.lt.s32.totalorder %s38, 1
        %s702 = scalar_select %p701, %s38, 1
        %s703 = scalar_lea.vmem %s2, %s702
        %p704 = pneg %p106
        %p705 = pneg %p103
        %s706 = smul.u32 16, %s38
        %p707 = scmp.lt.s32.totalorder %s706, 31
        %s708 = scalar_select %p707, %s706, 31
        %s709 = smul.addr %s708, 4
        %s710 = scalar_lea.vmem %s3, %s709
        %p711 = pneg %p132
        %p712 = pneg %p129
        %p713 = pneg %p153
        %p714 = pneg %p150
        %p715 = pneg %p174
        %p716 = pneg %p171
        %p717 = pneg %p195
        %p718 = pneg %p192
        %p719 = pneg %p216
        %p720 = pneg %p213
        %p721 = pneg %p237
        %p722 = pneg %p234
        %p723 = pneg %p258
        %p724 = pneg %p255
        %p725 = pneg %p279
        %p726 = pneg %p276
        %p727 = pneg %p300
        %p728 = pneg %p297
        %p729 = pneg %p321
        %p730 = pneg %p318
        %p731 = pneg %p342
        %p732 = pneg %p339
        %p733 = pneg %p363
        %p734 = pneg %p360
        %p735 = pneg %p384
        %p736 = pneg %p381
        %p737 = pneg %p405
        %p738 = pneg %p402
        %p739 = pneg %p426
        %p740 = pneg %p423
        %p741 = pneg %p447
        %p742 = pneg %p444
        %p743 = pneg %p468
        %p744 = pneg %p465
        %p745 = pneg %p489
        %p746 = pneg %p486
        %s747 = smul.u32 16, %s38
        %p748 = scmp.lt.s32.totalorder %s747, 31
        %s749 = scalar_select %p748, %s747, 31
        %s750 = smul.addr %s749, 4
        %s751 = scalar_lea.vmem %s1, %s750
        %s752 = smul.u32 16, %s38
        %p753 = scmp.lt.s32.totalorder %s38, 1
        %s754 = scalar_select %p753, %s38, 1
        %s755 = scalar_lea.vmem %s2, %s754
        %s756 = smul.u32 16, %s38
        %p757 = scmp.lt.s32.totalorder %s756, 31
        %s758 = scalar_select %p757, %s756, 31
        %s759 = smul.addr %s758, 4
        %s760 = scalar_lea.vmem %s3, %s759
        %s761 = smul.u32 16, %s38
        %p763 = scmp.eq.s32.totalorder %s38, 0
        // Predicated region
        $region133: #{gatmannp_forward.1} parent=99 // pred_check
          %p764 = pneg %p763
        $region134: #{gatmannp_forward.1} parent=99 // pred_check_branch
          %766 = sbr.rel (%p764) target = $region136
        $region135: #{gatmannp_forward.1} parent=99 // pred_region
          %767 = vst [vmem:[#allocation2] sm:$0x3] 0.0
        $region136: #{gatmannp_forward.1} parent=99 // pred_fallthru
          _
        %v768 = vld [vmem:[%s0] sm:$0x1]
        %v769 = vld [vmem:[%s751] sm:$0xf]
        %v770 = vld [vmem:[%s751 + $0x4] sm:$0xf]
        %v771 = vld [vmem:[%s751 + $0x8] sm:$0xf]
        %v772 = vld [vmem:[%s751 + $0xc] sm:$0xf]
        %v773 = vld [vmem:[%s751 + $0x10] sm:$0xf]
        %v774 = vld [vmem:[%s751 + $0x14] sm:$0xf]
        %v775 = vld [vmem:[%s751 + $0x18] sm:$0xf]
        %v776 = vld [vmem:[%s751 + $0x1c] sm:$0xf]
        %v777 = vld [vmem:[%s751 + $0x20] sm:$0xf]
        %v778 = vld [vmem:[%s751 + $0x24] sm:$0xf]
        %v779 = vld [vmem:[%s751 + $0x28] sm:$0xf]
        %v780 = vld [vmem:[%s751 + $0x2c] sm:$0xf]
        %v781 = vld [vmem:[%s751 + $0x30] sm:$0xf]
        %v782 = vld [vmem:[%s751 + $0x34] sm:$0xf]
        %v783 = vld [vmem:[%s751 + $0x38] sm:$0xf]
        %v784 = vld [vmem:[%s751 + $0x3c] sm:$0xf]
        %v785 = vld [vmem:[%s755] sm:$0x1]
        %v787 = vlaneseq
        %v788 = vshrl.u32 %v787, 7
        %v789 = vsub.s32 0, %v788
        %v790 = vrot.slane %v785, %v789
        %v808 = vunpack.c.l.b16 %v769
        %v809 = vunpack.c.l.b16 %v770
        %v810 = vunpack.c.l.b16 %v771
        %v811 = vunpack.c.l.b16 %v772
        %v812 = vunpack.c.l.b16 %v773
        %v813 = vunpack.c.l.b16 %v774
        %v814 = vunpack.c.l.b16 %v775
        %v815 = vunpack.c.l.b16 %v776
        %v816 = vunpack.c.l.b16 %v777
        %v817 = vunpack.c.l.b16 %v778
        %v818 = vunpack.c.l.b16 %v779
        %v819 = vunpack.c.l.b16 %v780
        %v820 = vunpack.c.l.b16 %v781
        %v821 = vunpack.c.l.b16 %v782
        %v822 = vunpack.c.l.b16 %v783
        %v823 = vunpack.c.l.b16 %v784
        %v824 = vpack.c.b16 %v809, %v808
        %v825 = vpack.c.b16 %v811, %v810
        %v826 = vpack.c.b16 %v813, %v812
        %v827 = vpack.c.b16 %v815, %v814
        %v828 = vpack.c.b16 %v817, %v816
        %v829 = vpack.c.b16 %v819, %v818
        %v830 = vpack.c.b16 %v821, %v820
        %v831 = vpack.c.b16 %v823, %v822
        %vm832 = vcmask 523264
        %v834 = vsel %vm832, %v768, 0
        %v837 = vsel %vm832, %v824, 0
        %v840 = vsel %vm832, %v825, 0
        %v843 = vsel %vm832, %v826, 0
        %v846 = vsel %vm832, %v827, 0
        %v849 = vsel %vm832, %v828, 0
        %v852 = vsel %vm832, %v829, 0
        %v855 = vsel %vm832, %v830, 0
        %v858 = vsel %vm832, %v831, 0
        %860 = vmatprep.subr.bf16.mxu0 0
        %861 = vmatpush1.bf16.xpose.msra.mxu0 %v858
        %862 = vmatprep.subr.bf16.mxu0 0
        %863 = vmatpush1.bf16.xpose.msra.mxu0 %v855
        %864 = vmatprep.subr.bf16.mxu0 0
        %865 = vmatpush1.bf16.xpose.msra.mxu0 %v852
        %866 = vmatprep.subr.bf16.mxu0 0
        %867 = vmatpush1.bf16.xpose.msra.mxu0 %v849
        %868 = vmatprep.subr.bf16.mxu0 0
        %869 = vmatpush1.bf16.xpose.msra.mxu0 %v846
        %870 = vmatprep.subr.bf16.mxu0 0
        %871 = vmatpush1.bf16.xpose.msra.mxu0 %v843
        %872 = vmatprep.subr.bf16.mxu0 0
        %873 = vmatpush1.bf16.xpose.msra.mxu0 %v840
        %874 = vmatprep.subr.bf16.mxu0 0
        %875 = vmatpush1.bf16.xpose.msra.mxu0 %v837
        %876 = vmatprep.subr.bf16.mxu0 0
        %877 = vmatpush2.bf16.xpose.msra.mxu0 0
        %878 = vmatprep.subr.bf16.mxu0 0
        %879 = vmatpush2.bf16.xpose.msra.mxu0 0
        %880 = vmatprep.subr.bf16.mxu0 0
        %881 = vmatpush2.bf16.xpose.msra.mxu0 0
        %882 = vmatprep.subr.bf16.mxu0 0
        %883 = vmatpush2.bf16.xpose.msra.mxu0 0
        %884 = vmatprep.subr.bf16.mxu0 0
        %885 = vmatpush2.bf16.xpose.msra.mxu0 0
        %886 = vmatprep.subr.bf16.mxu0 0
        %887 = vmatpush2.bf16.xpose.msra.mxu0 0
        %888 = vmatprep.subr.bf16.mxu0 0
        %889 = vmatpush2.bf16.xpose.msra.mxu0 0
        %890 = vmatprep.subr.bf16.mxu0 0
        %891 = vmatpush2.bf16.xpose.msra.mxu0 0
        %892 = vmatprep.mubr.bf16.mxu0 0
        %893 = vmatmul.mubr.bf16.gmra.mxu0 %v834
        %v894 = vpop.f32.mrf.mxu0
        %v895 = vadd.f32 %v790, %v894
        %v896 = vpop.f32.mrf.mxu0
        %v897 = vpop.f32.mrf.mxu0
        %v898 = vpop.f32.mrf.mxu0
        %899 = vdwg.mxu0
        %v900 = vmax.f32 %v895, 0.0
        %v901 = vld [vmem:[#allocation2] sm:$0x3]
        %v902 = vpack.c.bf16 %v900, %v900
        %v903 = vld [vmem:[%s760] sm:$0xf]
        %v904 = vld [vmem:[%s760 + $0x4] sm:$0xf]
        %v905 = vld [vmem:[%s760 + $0x8] sm:$0xf]
        %v906 = vld [vmem:[%s760 + $0xc] sm:$0xf]
        %v907 = vld [vmem:[%s760 + $0x10] sm:$0xf]
        %v908 = vld [vmem:[%s760 + $0x14] sm:$0xf]
        %v909 = vld [vmem:[%s760 + $0x18] sm:$0xf]
        %v910 = vld [vmem:[%s760 + $0x1c] sm:$0xf]
        %v911 = vld [vmem:[%s760 + $0x20] sm:$0xf]
        %v912 = vld [vmem:[%s760 + $0x24] sm:$0xf]
        %v913 = vld [vmem:[%s760 + $0x28] sm:$0xf]
        %v914 = vld [vmem:[%s760 + $0x2c] sm:$0xf]
        %v915 = vld [vmem:[%s760 + $0x30] sm:$0xf]
        %v916 = vld [vmem:[%s760 + $0x34] sm:$0xf]
        %v917 = vld [vmem:[%s760 + $0x38] sm:$0xf]
        %v918 = vld [vmem:[%s760 + $0x3c] sm:$0xf]
        %v935 = vunpack.c.l.b16 %v903
        %v936 = vunpack.c.l.b16 %v904
        %v937 = vunpack.c.l.b16 %v905
        %v938 = vunpack.c.l.b16 %v906
        %v939 = vunpack.c.l.b16 %v907
        %v940 = vunpack.c.l.b16 %v908
        %v941 = vunpack.c.l.b16 %v909
        %v942 = vunpack.c.l.b16 %v910
        %v943 = vunpack.c.l.b16 %v911
        %v944 = vunpack.c.l.b16 %v912
        %v945 = vunpack.c.l.b16 %v913
        %v946 = vunpack.c.l.b16 %v914
        %v947 = vunpack.c.l.b16 %v915
        %v948 = vunpack.c.l.b16 %v916
        %v949 = vunpack.c.l.b16 %v917
        %v950 = vunpack.c.l.b16 %v918
        %v951 = vpack.c.b16 %v936, %v935
        %v952 = vpack.c.b16 %v938, %v937
        %v953 = vpack.c.b16 %v940, %v939
        %v954 = vpack.c.b16 %v942, %v941
        %v955 = vpack.c.b16 %v944, %v943
        %v956 = vpack.c.b16 %v946, %v945
        %v957 = vpack.c.b16 %v948, %v947
        %v958 = vpack.c.b16 %v950, %v949
        %967 = vmatprep.subr.bf16.mxu0 0
        %968 = vmatpush1.bf16.msra.mxu0 %v958
        %969 = vmatprep.subr.bf16.mxu0 0
        %970 = vmatpush1.bf16.msra.mxu0 %v957
        %971 = vmatprep.subr.bf16.mxu0 0
        %972 = vmatpush1.bf16.msra.mxu0 %v956
        %973 = vmatprep.subr.bf16.mxu0 0
        %974 = vmatpush1.bf16.msra.mxu0 %v955
        %975 = vmatprep.subr.bf16.mxu0 0
        %976 = vmatpush1.bf16.msra.mxu0 %v954
        %977 = vmatprep.subr.bf16.mxu0 0
        %978 = vmatpush1.bf16.msra.mxu0 %v953
        %979 = vmatprep.subr.bf16.mxu0 0
        %980 = vmatpush1.bf16.msra.mxu0 %v952
        %981 = vmatprep.subr.bf16.mxu0 0
        %982 = vmatpush1.bf16.msra.mxu0 %v951
        %983 = vmatprep.subr.bf16.mxu0 0
        %984 = vmatpush2.bf16.msra.mxu0 0
        %985 = vmatprep.subr.bf16.mxu0 0
        %986 = vmatpush2.bf16.msra.mxu0 0
        %987 = vmatprep.subr.bf16.mxu0 0
        %988 = vmatpush2.bf16.msra.mxu0 0
        %989 = vmatprep.subr.bf16.mxu0 0
        %990 = vmatpush2.bf16.msra.mxu0 0
        %991 = vmatprep.subr.bf16.mxu0 0
        %992 = vmatpush2.bf16.msra.mxu0 0
        %993 = vmatprep.subr.bf16.mxu0 0
        %994 = vmatpush2.bf16.msra.mxu0 0
        %995 = vmatprep.subr.bf16.mxu0 0
        %996 = vmatpush2.bf16.msra.mxu0 0
        %997 = vmatprep.subr.bf16.mxu0 0
        %998 = vmatpush2.bf16.msra.mxu0 0
        %999 = vmatprep.mubr.bf16.mxu0 0
        %1000 = vmatmul.mubr.bf16.gmra.mxu0 %v902
        %v1001 = vpop.f32.mrf.mxu0
        %v1002 = vadd.f32 0.0, %v1001
        %v1003 = vpop.f32.mrf.mxu0
        %v1004 = vpop.f32.mrf.mxu0
        %v1005 = vpop.f32.mrf.mxu0
        %1006 = vdwg.mxu0
        %v1007 = vadd.f32 %v901, %v1002
        %1008 = vst [vmem:[#allocation2] sm:$0x3] %v1007
        %p1009 = scmp.eq.s32.totalorder %s38, 1
        // Predicated region
        $region137: #{gatmannp_forward.1} parent=99 // pred_check
          %p1010 = pneg %p1009
        $region138: #{gatmannp_forward.1} parent=99 // pred_check_branch
          %1012 = sbr.rel (%p1010) target = $region140
        $region139: #{gatmannp_forward.1} parent=99 // pred_region
          %v1013 = vld [vmem:[#allocation2] sm:$0x3]
          %v1014 = vld [vmem:[#allocation5] sm:$0x1]
          %v1016 = vlaneseq
          %v1017 = vshrl.u32 %v1016, 7
          %v1018 = vsub.s32 0, %v1017
          %v1019 = vrot.slane %v1014, %v1018
          %v1021 = vadd.f32 %v1013, %v1019
          %v1022 = vlaneseq
          %v1023 = vshrl.u32 %v1022, 7
          %v1024 = vld [vmem:[%s5] sm:$0x1]
          %v1025 = vlaneseq
          %v1026 = vshrl.u32 %v1025, 7
          %v1027 = vsub.s32 0, %v1026
          %v1028 = vrot.slane %v1024, %v1027
          %vm1029 = vcmp.eq.s32.totalorder %v1028, %v1023
          %v1030 = vsel %vm1029, 1, 0
          %v1031 = vcvt.s32.f32 %v1030
          %v1032 = vlaneseq
          %v1033 = vand.u32 %v1032, 127
          %v1034 = vld [vmem:[%s6] sm:$0xff]
          %v1035 = vld [vmem:[%s6 + $0x8] sm:$0xff]
          %1036 = vset.pattern.permute.xlu0 0
          %1037 = vperm.xlu0 %1036, %v1034
          %v1038 = vpop.permute.xlu0 %1037
          %1039 = vset.pattern.permute.xlu0 0
          %1040 = vperm.xlu0 %1039, %v1035
          %v1041 = vpop.permute.xlu0 %1040
          %vm1042 = vcmp.eq.s32.totalorder %v1038, %v1033
          %vm1043 = vcmp.eq.s32.totalorder %v1041, %v1033
          %v1044 = vsel %vm1042, 1, 0
          %v1045 = vsel %vm1043, 1, 0
          %v1046 = vcvt.s32.f32 %v1044
          %v1047 = vcvt.s32.f32 %v1045
          %vm1048 = vcmask 15360
          %v1050 = vsel %vm1048, %v1046, 0
          %v1053 = vsel %vm1048, %v1047, 0
          %vm1055 = vcmask 1041408
          %v1057 = vsel %vm1055, %v1021, 0
          %1059 = vmatprep.subr.mxu0 0.0
          %1060 = vmatpush1.msra.mxu0 0.0
          %1061 = vmatprep.subr.mxu0 0.0
          %1062 = vmatpush1.msra.mxu0 0.0
          %1063 = vmatprep.subr.mxu0 0.0
          %1064 = vmatpush1.msra.mxu0 0.0
          %1065 = vmatprep.subr.mxu0 0.0
          %1066 = vmatpush1.msra.mxu0 0.0
          %1067 = vmatprep.subr.mxu0 0.0
          %1068 = vmatpush1.msra.mxu0 0.0
          %1069 = vmatprep.subr.mxu0 0.0
          %1070 = vmatpush1.msra.mxu0 0.0
          %1071 = vmatprep.subr.mxu0 0.0
          %1072 = vmatpush1.msra.mxu0 0.0
          %1073 = vmatprep.subr.mxu0 0.0
          %1074 = vmatpush1.msra.mxu0 0.0
          %1075 = vmatprep.subr.mxu0 0.0
          %1076 = vmatpush1.msra.mxu0 0.0
          %1077 = vmatprep.subr.mxu0 0.0
          %1078 = vmatpush1.msra.mxu0 0.0
          %1079 = vmatprep.subr.mxu0 0.0
          %1080 = vmatpush1.msra.mxu0 0.0
          %1081 = vmatprep.subr.mxu0 0.0
          %1082 = vmatpush1.msra.mxu0 0.0
          %1083 = vmatprep.subr.mxu0 0.0
          %1084 = vmatpush1.msra.mxu0 0.0
          %1085 = vmatprep.subr.mxu0 0.0
          %1086 = vmatpush1.msra.mxu0 0.0
          %1087 = vmatprep.subr.mxu0 0.0
          %1088 = vmatpush1.msra.mxu0 0.0
          %1089 = vmatprep.subr.mxu0 0.0
          %1090 = vmatpush1.msra.mxu0 %v1057
          %1091 = vmatprep.subr.mxu0 0.0
          %1092 = vmatpush2.msra.mxu0 0.0
          %1093 = vmatprep.subr.mxu0 0.0
          %1094 = vmatpush2.msra.mxu0 0.0
          %1095 = vmatprep.subr.mxu0 0.0
          %1096 = vmatpush2.msra.mxu0 0.0
          %1097 = vmatprep.subr.mxu0 0.0
          %1098 = vmatpush2.msra.mxu0 0.0
          %1099 = vmatprep.subr.mxu0 0.0
          %1100 = vmatpush2.msra.mxu0 0.0
          %1101 = vmatprep.subr.mxu0 0.0
          %1102 = vmatpush2.msra.mxu0 0.0
          %1103 = vmatprep.subr.mxu0 0.0
          %1104 = vmatpush2.msra.mxu0 0.0
          %1105 = vmatprep.subr.mxu0 0.0
          %1106 = vmatpush2.msra.mxu0 0.0
          %1107 = vmatprep.subr.mxu0 0.0
          %1108 = vmatpush2.msra.mxu0 0.0
          %1109 = vmatprep.subr.mxu0 0.0
          %1110 = vmatpush2.msra.mxu0 0.0
          %1111 = vmatprep.subr.mxu0 0.0
          %1112 = vmatpush2.msra.mxu0 0.0
          %1113 = vmatprep.subr.mxu0 0.0
          %1114 = vmatpush2.msra.mxu0 0.0
          %1115 = vmatprep.subr.mxu0 0.0
          %1116 = vmatpush2.msra.mxu0 0.0
          %1117 = vmatprep.subr.mxu0 0.0
          %1118 = vmatpush2.msra.mxu0 0.0
          %1119 = vmatprep.subr.mxu0 0.0
          %1120 = vmatpush2.msra.mxu0 0.0
          %1121 = vmatprep.subr.mxu0 0.0
          %1122 = vmatpush2.msra.mxu0 0.0
          %1123 = vmatprep.mubr.f32.mxu0 0.0
          %1124 = vmatmul.mubr.f32.gmra.mxu0 %v1050
          %v1125 = vpop.f32.mrf.mxu0
          %v1126 = vadd.f32 0.0, %v1125
          %v1127 = vpop.f32.mrf.mxu0
          %1128 = vmatprep.mubr.f32.mxu0 0.0
          %1129 = vmatmul.mubr.f32.gmra.mxu0 %v1053
          %v1130 = vpop.f32.mrf.mxu0
          %v1131 = vadd.f32 0.0, %v1130
          %v1132 = vpop.f32.mrf.mxu0
          %1133 = vdwg.mxu0
          %v1134 = vld [vmem:[%s7] sm:$0xf]
          %v1135 = vld [vmem:[%s7 + $0x4] sm:$0xf]
          %v1136 = vld [vmem:[#allocation7] sm:$0xf]
          %v1137 = vld [vmem:[#allocation7 + $0x4] sm:$0xf]
          %v1138 = vld [vmem:[#allocation7 + $0x8] sm:$0xf]
          %v1139 = vld [vmem:[#allocation7 + $0xc] sm:$0xf]
          %v1140 = vld [vmem:[#allocation9] sm:$0x1]
          %v1142 = vlaneseq
          %v1143 = vshrl.u32 %v1142, 7
          %v1144 = vsub.s32 0, %v1143
          %v1145 = vrot.slane %v1140, %v1144
          %v1149 = vunpack.c.l.b16 %v1134
          %v1150 = vunpack.c.l.b16 %v1135
          %v1151 = vpack.c.b16 %v1150, %v1149
          %v1156 = vunpack.c.l.b16 %v1136
          %v1157 = vunpack.c.l.b16 %v1137
          %v1158 = vunpack.c.l.b16 %v1138
          %v1159 = vunpack.c.l.b16 %v1139
          %v1160 = vpack.c.b16 %v1157, %v1156
          %v1161 = vpack.c.b16 %v1159, %v1158
          %vm1164 = vcmask 261120
          %v1166 = vsel %vm1164, %v1151, 0
          %1168 = vmatprep.subr.bf16.mxu0 0
          %1169 = vmatpush1.bf16.msra.mxu0 0
          %1170 = vmatprep.subr.bf16.mxu0 0
          %1171 = vmatpush1.bf16.msra.mxu0 0
          %1172 = vmatprep.subr.bf16.mxu0 0
          %1173 = vmatpush1.bf16.msra.mxu0 0
          %1174 = vmatprep.subr.bf16.mxu0 0
          %1175 = vmatpush1.bf16.msra.mxu0 0
          %1176 = vmatprep.subr.bf16.mxu0 0
          %1177 = vmatpush1.bf16.msra.mxu0 0
          %1178 = vmatprep.subr.bf16.mxu0 0
          %1179 = vmatpush1.bf16.msra.mxu0 0
          %1180 = vmatprep.subr.bf16.mxu0 0
          %1181 = vmatpush1.bf16.msra.mxu0 %v1161
          %1182 = vmatprep.subr.bf16.mxu0 0
          %1183 = vmatpush1.bf16.msra.mxu0 %v1160
          %1184 = vmatprep.subr.bf16.mxu0 0
          %1185 = vmatpush2.bf16.msra.mxu0 0
          %1186 = vmatprep.subr.bf16.mxu0 0
          %1187 = vmatpush2.bf16.msra.mxu0 0
          %1188 = vmatprep.subr.bf16.mxu0 0
          %1189 = vmatpush2.bf16.msra.mxu0 0
          %1190 = vmatprep.subr.bf16.mxu0 0
          %1191 = vmatpush2.bf16.msra.mxu0 0
          %1192 = vmatprep.subr.bf16.mxu0 0
          %1193 = vmatpush2.bf16.msra.mxu0 0
          %1194 = vmatprep.subr.bf16.mxu0 0
          %1195 = vmatpush2.bf16.msra.mxu0 0
          %1196 = vmatprep.subr.bf16.mxu0 0
          %1197 = vmatpush2.bf16.msra.mxu0 0
          %1198 = vmatprep.subr.bf16.mxu0 0
          %1199 = vmatpush2.bf16.msra.mxu0 0
          %1200 = vmatprep.mubr.bf16.mxu0 0
          %1201 = vmatmul.mubr.bf16.gmra.mxu0 %v1166
          %v1202 = vpop.f32.mrf.mxu0
          %v1203 = vadd.f32 %v1145, %v1202
          %v1204 = vpop.f32.mrf.mxu0
          %v1205 = vpop.f32.mrf.mxu0
          %v1206 = vadd.f32 %v1145, %v1205
          %v1207 = vpop.f32.mrf.mxu0
          %1208 = vdwg.mxu0
          %v1209 = vadd.f32 %v1203, %v1126
          %v1210 = vadd.f32 %v1206, %v1131
          %v1211 = vpack.c.bf16 %v1210, %v1209
          %v1212 = vld [vmem:[%s10] sm:$0xf]
          %v1213 = vld [vmem:[%s10 + $0x4] sm:$0xf]
          %v1214 = vld [vmem:[%s10 + $0x8] sm:$0xf]
          %v1215 = vld [vmem:[%s10 + $0xc] sm:$0xf]
          %v1216 = vld [vmem:[%s10 + $0x10] sm:$0xf]
          %v1217 = vld [vmem:[%s10 + $0x14] sm:$0xf]
          %v1218 = vld [vmem:[%s10 + $0x18] sm:$0xf]
          %v1219 = vld [vmem:[%s10 + $0x1c] sm:$0xf]
          %v1220 = vld [vmem:[%s10 + $0x20] sm:$0xf]
          %v1221 = vld [vmem:[%s10 + $0x24] sm:$0xf]
          %v1222 = vld [vmem:[%s10 + $0x28] sm:$0xf]
          %v1223 = vld [vmem:[%s10 + $0x2c] sm:$0xf]
          %v1224 = vld [vmem:[%s10 + $0x30] sm:$0xf]
          %v1225 = vld [vmem:[%s10 + $0x34] sm:$0xf]
          %v1226 = vld [vmem:[%s10 + $0x38] sm:$0xf]
          %v1227 = vld [vmem:[%s10 + $0x3c] sm:$0xf]
          %v1228 = vld [vmem:[#allocation10] sm:$0x1]
          %v1230 = vlaneseq
          %v1231 = vshrl.u32 %v1230, 7
          %v1232 = vsub.s32 0, %v1231
          %v1233 = vrot.slane %v1228, %v1232
          %v1251 = vunpack.c.l.b16 %v1212
          %v1252 = vunpack.c.l.b16 %v1213
          %v1253 = vunpack.c.l.b16 %v1214
          %v1254 = vunpack.c.l.b16 %v1215
          %v1255 = vunpack.c.l.b16 %v1216
          %v1256 = vunpack.c.l.b16 %v1217
          %v1257 = vunpack.c.l.b16 %v1218
          %v1258 = vunpack.c.l.b16 %v1219
          %v1259 = vunpack.c.l.b16 %v1220
          %v1260 = vunpack.c.l.b16 %v1221
          %v1261 = vunpack.c.l.b16 %v1222
          %v1262 = vunpack.c.l.b16 %v1223
          %v1263 = vunpack.c.l.b16 %v1224
          %v1264 = vunpack.c.l.b16 %v1225
          %v1265 = vunpack.c.l.b16 %v1226
          %v1266 = vunpack.c.l.b16 %v1227
          %v1267 = vpack.c.b16 %v1252, %v1251
          %v1268 = vpack.c.b16 %v1254, %v1253
          %v1269 = vpack.c.b16 %v1256, %v1255
          %v1270 = vpack.c.b16 %v1258, %v1257
          %v1271 = vpack.c.b16 %v1260, %v1259
          %v1272 = vpack.c.b16 %v1262, %v1261
          %v1273 = vpack.c.b16 %v1264, %v1263
          %v1274 = vpack.c.b16 %v1266, %v1265
          %1283 = vmatprep.subr.bf16.mxu0 0
          %1284 = vmatpush1.bf16.msra.mxu0 %v1274
          %1285 = vmatprep.subr.bf16.mxu0 0
          %1286 = vmatpush1.bf16.msra.mxu0 %v1273
          %1287 = vmatprep.subr.bf16.mxu0 0
          %1288 = vmatpush1.bf16.msra.mxu0 %v1272
          %1289 = vmatprep.subr.bf16.mxu0 0
          %1290 = vmatpush1.bf16.msra.mxu0 %v1271
          %1291 = vmatprep.subr.bf16.mxu0 0
          %1292 = vmatpush1.bf16.msra.mxu0 %v1270
          %1293 = vmatprep.subr.bf16.mxu0 0
          %1294 = vmatpush1.bf16.msra.mxu0 %v1269
          %1295 = vmatprep.subr.bf16.mxu0 0
          %1296 = vmatpush1.bf16.msra.mxu0 %v1268
          %1297 = vmatprep.subr.bf16.mxu0 0
          %1298 = vmatpush1.bf16.msra.mxu0 %v1267
          %1299 = vmatprep.subr.bf16.mxu0 0
          %1300 = vmatpush2.bf16.msra.mxu0 0
          %1301 = vmatprep.subr.bf16.mxu0 0
          %1302 = vmatpush2.bf16.msra.mxu0 0
          %1303 = vmatprep.subr.bf16.mxu0 0
          %1304 = vmatpush2.bf16.msra.mxu0 0
          %1305 = vmatprep.subr.bf16.mxu0 0
          %1306 = vmatpush2.bf16.msra.mxu0 0
          %1307 = vmatprep.subr.bf16.mxu0 0
          %1308 = vmatpush2.bf16.msra.mxu0 0
          %1309 = vmatprep.subr.bf16.mxu0 0
          %1310 = vmatpush2.bf16.msra.mxu0 0
          %1311 = vmatprep.subr.bf16.mxu0 0
          %1312 = vmatpush2.bf16.msra.mxu0 0
          %1313 = vmatprep.subr.bf16.mxu0 0
          %1314 = vmatpush2.bf16.msra.mxu0 0
          %1315 = vmatprep.mubr.bf16.mxu0 0
          %1316 = vmatmul.mubr.bf16.gmra.mxu0 %v1211
          %v1317 = vpop.f32.mrf.mxu0
          %v1318 = vadd.f32 %v1233, %v1317
          %v1319 = vpop.f32.mrf.mxu0
          %v1320 = vpop.f32.mrf.mxu0
          %v1321 = vadd.f32 %v1233, %v1320
          %v1322 = vpop.f32.mrf.mxu0
          %1323 = vdwg.mxu0
          %v1324 = vmax.f32 %v1318, 0.0
          %v1325 = vmax.f32 %v1321, 0.0
          %v1326 = vpack.c.bf16 %v1325, %v1324
          %v1327 = vld [vmem:[#allocation12] sm:$0xf]
          %v1328 = vld [vmem:[#allocation12 + $0x4] sm:$0xf]
          %v1329 = vld [vmem:[#allocation12 + $0x8] sm:$0xf]
          %v1330 = vld [vmem:[#allocation12 + $0xc] sm:$0xf]
          %v1331 = vld [vmem:[#allocation12 + $0x10] sm:$0xf]
          %v1332 = vld [vmem:[#allocation12 + $0x14] sm:$0xf]
          %v1333 = vld [vmem:[#allocation12 + $0x18] sm:$0xf]
          %v1334 = vld [vmem:[#allocation12 + $0x1c] sm:$0xf]
          %v1335 = vld [vmem:[#allocation12 + $0x20] sm:$0xf]
          %v1336 = vld [vmem:[#allocation12 + $0x24] sm:$0xf]
          %v1337 = vld [vmem:[#allocation12 + $0x28] sm:$0xf]
          %v1338 = vld [vmem:[#allocation12 + $0x2c] sm:$0xf]
          %v1339 = vld [vmem:[#allocation12 + $0x30] sm:$0xf]
          %v1340 = vld [vmem:[#allocation12 + $0x34] sm:$0xf]
          %v1341 = vld [vmem:[#allocation12 + $0x38] sm:$0xf]
          %v1342 = vld [vmem:[#allocation12 + $0x3c] sm:$0xf]
          %v1343 = vld [vmem:[#allocation13] sm:$0x1]
          %v1345 = vlaneseq
          %v1346 = vshrl.u32 %v1345, 7
          %v1347 = vsub.s32 0, %v1346
          %v1348 = vrot.slane %v1343, %v1347
          %v1366 = vunpack.c.l.b16 %v1327
          %v1367 = vunpack.c.l.b16 %v1328
          %v1368 = vunpack.c.l.b16 %v1329
          %v1369 = vunpack.c.l.b16 %v1330
          %v1370 = vunpack.c.l.b16 %v1331
          %v1371 = vunpack.c.l.b16 %v1332
          %v1372 = vunpack.c.l.b16 %v1333
          %v1373 = vunpack.c.l.b16 %v1334
          %v1374 = vunpack.c.l.b16 %v1335
          %v1375 = vunpack.c.l.b16 %v1336
          %v1376 = vunpack.c.l.b16 %v1337
          %v1377 = vunpack.c.l.b16 %v1338
          %v1378 = vunpack.c.l.b16 %v1339
          %v1379 = vunpack.c.l.b16 %v1340
          %v1380 = vunpack.c.l.b16 %v1341
          %v1381 = vunpack.c.l.b16 %v1342
          %v1382 = vpack.c.b16 %v1367, %v1366
          %v1383 = vpack.c.b16 %v1369, %v1368
          %v1384 = vpack.c.b16 %v1371, %v1370
          %v1385 = vpack.c.b16 %v1373, %v1372
          %v1386 = vpack.c.b16 %v1375, %v1374
          %v1387 = vpack.c.b16 %v1377, %v1376
          %v1388 = vpack.c.b16 %v1379, %v1378
          %v1389 = vpack.c.b16 %v1381, %v1380
          %1398 = vmatprep.subr.bf16.mxu0 0
          %1399 = vmatpush1.bf16.msra.mxu0 %v1389
          %1400 = vmatprep.subr.bf16.mxu0 0
          %1401 = vmatpush1.bf16.msra.mxu0 %v1388
          %1402 = vmatprep.subr.bf16.mxu0 0
          %1403 = vmatpush1.bf16.msra.mxu0 %v1387
          %1404 = vmatprep.subr.bf16.mxu0 0
          %1405 = vmatpush1.bf16.msra.mxu0 %v1386
          %1406 = vmatprep.subr.bf16.mxu0 0
          %1407 = vmatpush1.bf16.msra.mxu0 %v1385
          %1408 = vmatprep.subr.bf16.mxu0 0
          %1409 = vmatpush1.bf16.msra.mxu0 %v1384
          %1410 = vmatprep.subr.bf16.mxu0 0
          %1411 = vmatpush1.bf16.msra.mxu0 %v1383
          %1412 = vmatprep.subr.bf16.mxu0 0
          %1413 = vmatpush1.bf16.msra.mxu0 %v1382
          %1414 = vmatprep.subr.bf16.mxu0 0
          %1415 = vmatpush2.bf16.msra.mxu0 0
          %1416 = vmatprep.subr.bf16.mxu0 0
          %1417 = vmatpush2.bf16.msra.mxu0 0
          %1418 = vmatprep.subr.bf16.mxu0 0
          %1419 = vmatpush2.bf16.msra.mxu0 0
          %1420 = vmatprep.subr.bf16.mxu0 0
          %1421 = vmatpush2.bf16.msra.mxu0 0
          %1422 = vmatprep.subr.bf16.mxu0 0
          %1423 = vmatpush2.bf16.msra.mxu0 0
          %1424 = vmatprep.subr.bf16.mxu0 0
          %1425 = vmatpush2.bf16.msra.mxu0 0
          %1426 = vmatprep.subr.bf16.mxu0 0
          %1427 = vmatpush2.bf16.msra.mxu0 0
          %1428 = vmatprep.subr.bf16.mxu0 0
          %1429 = vmatpush2.bf16.msra.mxu0 0
          %1430 = vmatprep.mubr.bf16.mxu0 0
          %1431 = vmatmul.mubr.bf16.gmra.mxu0 %v1326
          %v1432 = vpop.f32.mrf.mxu0
          %v1433 = vadd.f32 %v1348, %v1432
          %v1434 = vpop.f32.mrf.mxu0
          %v1435 = vpop.f32.mrf.mxu0
          %v1436 = vadd.f32 %v1348, %v1435
          %v1437 = vpop.f32.mrf.mxu0
          %1438 = vdwg.mxu0
          %v1439 = vld [vmem:[%s14] sm:$0x1]
          %v1441 = vlaneseq
          %v1442 = vshrl.u32 %v1441, 7
          %v1443 = vsub.s32 0, %v1442
          %v1444 = vrot.slane %v1439, %v1443
          %v1446 = vmul.f32 %v1324, %v1444
          %v1447 = vmul.f32 %v1325, %v1444
          %1448 = vadd.xlane.f32.xlu0 %v1446
          %v1449 = vpop.xlane.xlu0 %1448
          %1450 = vadd.xlane.f32.xlu0 %v1447
          %v1451 = vpop.xlane.xlu0 %1450
          %s1452 = sld [smem:[#allocation3]]
          %v1453 = vstv %s1452
          %v1454 = vadd.f32 %v1449, %v1453
          %v1455 = vadd.f32 %v1451, %v1453
          %v1456 = vsel %vm1042, %v1454, -1e+30
          %v1457 = vsel %vm1043, %v1455, -1e+30
          %v1458 = vsel %vm1048, %v1456, -inf
          %v1459 = vsel %vm1048, %v1457, -inf
          %v1460 = vmax.f32 %v1458, %v1459
          %v1461 = vrot.slane %v1460, 4
          %v1462 = vmax.f32 %v1460, %v1461
          %v1463 = vrot.slane %v1462, 2
          %v1464 = vmax.f32 %v1462, %v1463
          %v1465 = vrot.slane %v1464, 1
          %v1466 = vmax.f32 %v1464, %v1465
          %v1467 = vsel %vm1042, %v1466, -1e+30
          %v1468 = vsel %vm1043, %v1466, -1e+30
          %v1469 = vsel %vm1048, %v1467, -inf
          %1470 = vmax.xlane.f32.xlu0 %v1469
          %v1471 = vpop.xlane.xlu0 %1470
          %v1472 = vsel %vm1048, %v1468, -inf
          %1473 = vmax.xlane.f32.xlu0 %v1472
          %v1474 = vpop.xlane.xlu0 %1473
          %v1475 = vsub.f32 %v1454, %v1471
          %v1476 = vsub.f32 %v1455, %v1474
          %v1477 = vmin.f32 %v1475, 0.0
          %v1478 = vmin.f32 %v1476, 0.0
          %v1479 = vmul.f32 %v1477, 1.442695
          %v1480 = vpow.pop %v1479
          %v1481 = vmul.f32 %v1478, 1.442695
          %v1482 = vpow.pop %v1481
          %vm1483 = vcmask 130048
          %v1485 = vsel %vm1483, %v1031, 0
          %1487 = vmatprep.subr.mxu0 0.0
          %1488 = vmatpush1.msra.mxu0 0.0
          %1489 = vmatprep.subr.mxu0 0.0
          %1490 = vmatpush1.msra.mxu0 0.0
          %1491 = vmatprep.subr.mxu0 0.0
          %1492 = vmatpush1.msra.mxu0 0.0
          %1493 = vmatprep.subr.mxu0 0.0
          %1494 = vmatpush1.msra.mxu0 0.0
          %1495 = vmatprep.subr.mxu0 0.0
          %1496 = vmatpush1.msra.mxu0 0.0
          %1497 = vmatprep.subr.mxu0 0.0
          %1498 = vmatpush1.msra.mxu0 0.0
          %1499 = vmatprep.subr.mxu0 0.0
          %1500 = vmatpush1.msra.mxu0 0.0
          %1501 = vmatprep.subr.mxu0 0.0
          %1502 = vmatpush1.msra.mxu0 0.0
          %1503 = vmatprep.subr.mxu0 0.0
          %1504 = vmatpush1.msra.mxu0 0.0
          %1505 = vmatprep.subr.mxu0 0.0
          %1506 = vmatpush1.msra.mxu0 0.0
          %1507 = vmatprep.subr.mxu0 0.0
          %1508 = vmatpush1.msra.mxu0 0.0
          %1509 = vmatprep.subr.mxu0 0.0
          %1510 = vmatpush1.msra.mxu0 0.0
          %1511 = vmatprep.subr.mxu0 0.0
          %1512 = vmatpush1.msra.mxu0 0.0
          %1513 = vmatprep.subr.mxu0 0.0
          %1514 = vmatpush1.msra.mxu0 0.0
          %1515 = vmatprep.subr.mxu0 0.0
          %1516 = vmatpush1.msra.mxu0 %v1482
          %1517 = vmatprep.subr.mxu0 0.0
          %1518 = vmatpush1.msra.mxu0 %v1480
          %1519 = vmatprep.subr.mxu0 0.0
          %1520 = vmatpush2.msra.mxu0 0.0
          %1521 = vmatprep.subr.mxu0 0.0
          %1522 = vmatpush2.msra.mxu0 0.0
          %1523 = vmatprep.subr.mxu0 0.0
          %1524 = vmatpush2.msra.mxu0 0.0
          %1525 = vmatprep.subr.mxu0 0.0
          %1526 = vmatpush2.msra.mxu0 0.0
          %1527 = vmatprep.subr.mxu0 0.0
          %1528 = vmatpush2.msra.mxu0 0.0
          %1529 = vmatprep.subr.mxu0 0.0
          %1530 = vmatpush2.msra.mxu0 0.0
          %1531 = vmatprep.subr.mxu0 0.0
          %1532 = vmatpush2.msra.mxu0 0.0
          %1533 = vmatprep.subr.mxu0 0.0
          %1534 = vmatpush2.msra.mxu0 0.0
          %1535 = vmatprep.subr.mxu0 0.0
          %1536 = vmatpush2.msra.mxu0 0.0
          %1537 = vmatprep.subr.mxu0 0.0
          %1538 = vmatpush2.msra.mxu0 0.0
          %1539 = vmatprep.subr.mxu0 0.0
          %1540 = vmatpush2.msra.mxu0 0.0
          %1541 = vmatprep.subr.mxu0 0.0
          %1542 = vmatpush2.msra.mxu0 0.0
          %1543 = vmatprep.subr.mxu0 0.0
          %1544 = vmatpush2.msra.mxu0 0.0
          %1545 = vmatprep.subr.mxu0 0.0
          %1546 = vmatpush2.msra.mxu0 0.0
          %1547 = vmatprep.subr.mxu0 0.0
          %1548 = vmatpush2.msra.mxu0 0.0
          %1549 = vmatprep.subr.mxu0 0.0
          %1550 = vmatpush2.msra.mxu0 0.0
          %1551 = vmatprep.mubr.f32.mxu0 0.0
          %1552 = vmatmul.mubr.f32.gmra.mxu0 %v1485
          %v1553 = vpop.f32.mrf.mxu0
          %v1554 = vadd.f32 0.0, %v1553
          %v1555 = vpop.f32.mrf.mxu0
          %1556 = vdwg.mxu0
          %v1558 = vsel %vm1055, %v1554, 0
          %1560 = vmatprep.subr.mxu0 0.0
          %1561 = vmatpush1.msra.mxu0 0.0
          %1562 = vmatprep.subr.mxu0 0.0
          %1563 = vmatpush1.msra.mxu0 0.0
          %1564 = vmatprep.subr.mxu0 0.0
          %1565 = vmatpush1.msra.mxu0 0.0
          %1566 = vmatprep.subr.mxu0 0.0
          %1567 = vmatpush1.msra.mxu0 0.0
          %1568 = vmatprep.subr.mxu0 0.0
          %1569 = vmatpush1.msra.mxu0 0.0
          %1570 = vmatprep.subr.mxu0 0.0
          %1571 = vmatpush1.msra.mxu0 0.0
          %1572 = vmatprep.subr.mxu0 0.0
          %1573 = vmatpush1.msra.mxu0 0.0
          %1574 = vmatprep.subr.mxu0 0.0
          %1575 = vmatpush1.msra.mxu0 0.0
          %1576 = vmatprep.subr.mxu0 0.0
          %1577 = vmatpush1.msra.mxu0 0.0
          %1578 = vmatprep.subr.mxu0 0.0
          %1579 = vmatpush1.msra.mxu0 0.0
          %1580 = vmatprep.subr.mxu0 0.0
          %1581 = vmatpush1.msra.mxu0 0.0
          %1582 = vmatprep.subr.mxu0 0.0
          %1583 = vmatpush1.msra.mxu0 0.0
          %1584 = vmatprep.subr.mxu0 0.0
          %1585 = vmatpush1.msra.mxu0 0.0
          %1586 = vmatprep.subr.mxu0 0.0
          %1587 = vmatpush1.msra.mxu0 0.0
          %1588 = vmatprep.subr.mxu0 0.0
          %1589 = vmatpush1.msra.mxu0 0.0
          %1590 = vmatprep.subr.mxu0 0.0
          %1591 = vmatpush1.msra.mxu0 %v1558
          %1592 = vmatprep.subr.mxu0 0.0
          %1593 = vmatpush2.msra.mxu0 0.0
          %1594 = vmatprep.subr.mxu0 0.0
          %1595 = vmatpush2.msra.mxu0 0.0
          %1596 = vmatprep.subr.mxu0 0.0
          %1597 = vmatpush2.msra.mxu0 0.0
          %1598 = vmatprep.subr.mxu0 0.0
          %1599 = vmatpush2.msra.mxu0 0.0
          %1600 = vmatprep.subr.mxu0 0.0
          %1601 = vmatpush2.msra.mxu0 0.0
          %1602 = vmatprep.subr.mxu0 0.0
          %1603 = vmatpush2.msra.mxu0 0.0
          %1604 = vmatprep.subr.mxu0 0.0
          %1605 = vmatpush2.msra.mxu0 0.0
          %1606 = vmatprep.subr.mxu0 0.0
          %1607 = vmatpush2.msra.mxu0 0.0
          %1608 = vmatprep.subr.mxu0 0.0
          %1609 = vmatpush2.msra.mxu0 0.0
          %1610 = vmatprep.subr.mxu0 0.0
          %1611 = vmatpush2.msra.mxu0 0.0
          %1612 = vmatprep.subr.mxu0 0.0
          %1613 = vmatpush2.msra.mxu0 0.0
          %1614 = vmatprep.subr.mxu0 0.0
          %1615 = vmatpush2.msra.mxu0 0.0
          %1616 = vmatprep.subr.mxu0 0.0
          %1617 = vmatpush2.msra.mxu0 0.0
          %1618 = vmatprep.subr.mxu0 0.0
          %1619 = vmatpush2.msra.mxu0 0.0
          %1620 = vmatprep.subr.mxu0 0.0
          %1621 = vmatpush2.msra.mxu0 0.0
          %1622 = vmatprep.subr.mxu0 0.0
          %1623 = vmatpush2.msra.mxu0 0.0
          %1624 = vmatprep.mubr.f32.mxu0 0.0
          %1625 = vmatmul.mubr.f32.gmra.mxu0 %v1050
          %v1626 = vpop.f32.mrf.mxu0
          %v1627 = vadd.f32 0.0, %v1626
          %v1628 = vpop.f32.mrf.mxu0
          %1629 = vmatprep.mubr.f32.mxu0 0.0
          %1630 = vmatmul.mubr.f32.gmra.mxu0 %v1053
          %v1631 = vpop.f32.mrf.mxu0
          %v1632 = vadd.f32 0.0, %v1631
          %v1633 = vpop.f32.mrf.mxu0
          %1634 = vdwg.mxu0
          %v1635 = vmax.f32 %v1627, 1e-30
          %v1636 = vmax.f32 %v1632, 1e-30
          %v1637 = vrcp.pop %v1635
          %v1638 = vrcp.pop %v1636
          %v1639 = vmul.f32 %v1480, %v1637
          %v1640 = vmul.f32 %v1482, %v1638
          %1642 = vset.pattern.permute.xlu0 0
          %1643 = vperm.xlu0 %1642, %v1639
          %v1644 = vpop.permute.xlu0 %1643
          %1647 = vset.pattern.permute.xlu0 0
          %1648 = vperm.xlu0 %1647, %v1640
          %v1649 = vpop.permute.xlu0 %1648
          %v1651 = vmul.f32 %v1433, %v1644
          %v1652 = vmul.f32 %v1436, %v1649
          %1653 = vmatprep.subr.mxu0 0.0
          %1654 = vmatpush1.msra.mxu0 0.0
          %1655 = vmatprep.subr.mxu0 0.0
          %1656 = vmatpush1.msra.mxu0 0.0
          %1657 = vmatprep.subr.mxu0 0.0
          %1658 = vmatpush1.msra.mxu0 0.0
          %1659 = vmatprep.subr.mxu0 0.0
          %1660 = vmatpush1.msra.mxu0 0.0
          %1661 = vmatprep.subr.mxu0 0.0
          %1662 = vmatpush1.msra.mxu0 0.0
          %1663 = vmatprep.subr.mxu0 0.0
          %1664 = vmatpush1.msra.mxu0 0.0
          %1665 = vmatprep.subr.mxu0 0.0
          %1666 = vmatpush1.msra.mxu0 0.0
          %1667 = vmatprep.subr.mxu0 0.0
          %1668 = vmatpush1.msra.mxu0 0.0
          %1669 = vmatprep.subr.mxu0 0.0
          %1670 = vmatpush1.msra.mxu0 0.0
          %1671 = vmatprep.subr.mxu0 0.0
          %1672 = vmatpush1.msra.mxu0 0.0
          %1673 = vmatprep.subr.mxu0 0.0
          %1674 = vmatpush1.msra.mxu0 0.0
          %1675 = vmatprep.subr.mxu0 0.0
          %1676 = vmatpush1.msra.mxu0 0.0
          %1677 = vmatprep.subr.mxu0 0.0
          %1678 = vmatpush1.msra.mxu0 0.0
          %1679 = vmatprep.subr.mxu0 0.0
          %1680 = vmatpush1.msra.mxu0 0.0
          %1681 = vmatprep.subr.mxu0 0.0
          %1682 = vmatpush1.msra.mxu0 %v1652
          %1683 = vmatprep.subr.mxu0 0.0
          %1684 = vmatpush1.msra.mxu0 %v1651
          %1685 = vmatprep.subr.mxu0 0.0
          %1686 = vmatpush2.msra.mxu0 0.0
          %1687 = vmatprep.subr.mxu0 0.0
          %1688 = vmatpush2.msra.mxu0 0.0
          %1689 = vmatprep.subr.mxu0 0.0
          %1690 = vmatpush2.msra.mxu0 0.0
          %1691 = vmatprep.subr.mxu0 0.0
          %1692 = vmatpush2.msra.mxu0 0.0
          %1693 = vmatprep.subr.mxu0 0.0
          %1694 = vmatpush2.msra.mxu0 0.0
          %1695 = vmatprep.subr.mxu0 0.0
          %1696 = vmatpush2.msra.mxu0 0.0
          %1697 = vmatprep.subr.mxu0 0.0
          %1698 = vmatpush2.msra.mxu0 0.0
          %1699 = vmatprep.subr.mxu0 0.0
          %1700 = vmatpush2.msra.mxu0 0.0
          %1701 = vmatprep.subr.mxu0 0.0
          %1702 = vmatpush2.msra.mxu0 0.0
          %1703 = vmatprep.subr.mxu0 0.0
          %1704 = vmatpush2.msra.mxu0 0.0
          %1705 = vmatprep.subr.mxu0 0.0
          %1706 = vmatpush2.msra.mxu0 0.0
          %1707 = vmatprep.subr.mxu0 0.0
          %1708 = vmatpush2.msra.mxu0 0.0
          %1709 = vmatprep.subr.mxu0 0.0
          %1710 = vmatpush2.msra.mxu0 0.0
          %1711 = vmatprep.subr.mxu0 0.0
          %1712 = vmatpush2.msra.mxu0 0.0
          %1713 = vmatprep.subr.mxu0 0.0
          %1714 = vmatpush2.msra.mxu0 0.0
          %1715 = vmatprep.subr.mxu0 0.0
          %1716 = vmatpush2.msra.mxu0 0.0
          %1717 = vmatprep.mubr.f32.mxu0 0.0
          %1718 = vmatmul.mubr.f32.gmra.mxu0 %v1485
          %v1719 = vpop.f32.mrf.mxu0
          %v1720 = vadd.f32 0.0, %v1719
          %v1721 = vpop.f32.mrf.mxu0
          %1722 = vdwg.mxu0
          %v1723 = vmax.f32 %v1720, 0.0
          %v1724 = vpack.c.bf16 %v1723, %v1723
          %v1725 = vld [vmem:[#allocation15] sm:$0xf]
          %v1726 = vld [vmem:[#allocation15 + $0x4] sm:$0xf]
          %v1727 = vld [vmem:[#allocation15 + $0x8] sm:$0xf]
          %v1728 = vld [vmem:[#allocation15 + $0xc] sm:$0xf]
          %v1729 = vld [vmem:[#allocation15 + $0x10] sm:$0xf]
          %v1730 = vld [vmem:[#allocation15 + $0x14] sm:$0xf]
          %v1731 = vld [vmem:[#allocation15 + $0x18] sm:$0xf]
          %v1732 = vld [vmem:[#allocation15 + $0x1c] sm:$0xf]
          %v1733 = vld [vmem:[#allocation15 + $0x20] sm:$0xf]
          %v1734 = vld [vmem:[#allocation15 + $0x24] sm:$0xf]
          %v1735 = vld [vmem:[#allocation15 + $0x28] sm:$0xf]
          %v1736 = vld [vmem:[#allocation15 + $0x2c] sm:$0xf]
          %v1737 = vld [vmem:[#allocation15 + $0x30] sm:$0xf]
          %v1738 = vld [vmem:[#allocation15 + $0x34] sm:$0xf]
          %v1739 = vld [vmem:[#allocation15 + $0x38] sm:$0xf]
          %v1740 = vld [vmem:[#allocation15 + $0x3c] sm:$0xf]
          %v1741 = vld [vmem:[#allocation16] sm:$0x1]
          %v1743 = vlaneseq
          %v1744 = vshrl.u32 %v1743, 7
          %v1745 = vsub.s32 0, %v1744
          %v1746 = vrot.slane %v1741, %v1745
          %v1764 = vunpack.c.l.b16 %v1725
          %v1765 = vunpack.c.l.b16 %v1726
          %v1766 = vunpack.c.l.b16 %v1727
          %v1767 = vunpack.c.l.b16 %v1728
          %v1768 = vunpack.c.l.b16 %v1729
          %v1769 = vunpack.c.l.b16 %v1730
          %v1770 = vunpack.c.l.b16 %v1731
          %v1771 = vunpack.c.l.b16 %v1732
          %v1772 = vunpack.c.l.b16 %v1733
          %v1773 = vunpack.c.l.b16 %v1734
          %v1774 = vunpack.c.l.b16 %v1735
          %v1775 = vunpack.c.l.b16 %v1736
          %v1776 = vunpack.c.l.b16 %v1737
          %v1777 = vunpack.c.l.b16 %v1738
          %v1778 = vunpack.c.l.b16 %v1739
          %v1779 = vunpack.c.l.b16 %v1740
          %v1780 = vpack.c.b16 %v1765, %v1764
          %v1781 = vpack.c.b16 %v1767, %v1766
          %v1782 = vpack.c.b16 %v1769, %v1768
          %v1783 = vpack.c.b16 %v1771, %v1770
          %v1784 = vpack.c.b16 %v1773, %v1772
          %v1785 = vpack.c.b16 %v1775, %v1774
          %v1786 = vpack.c.b16 %v1777, %v1776
          %v1787 = vpack.c.b16 %v1779, %v1778
          %1796 = vmatprep.subr.bf16.mxu0 0
          %1797 = vmatpush1.bf16.msra.mxu0 %v1787
          %1798 = vmatprep.subr.bf16.mxu0 0
          %1799 = vmatpush1.bf16.msra.mxu0 %v1786
          %1800 = vmatprep.subr.bf16.mxu0 0
          %1801 = vmatpush1.bf16.msra.mxu0 %v1785
          %1802 = vmatprep.subr.bf16.mxu0 0
          %1803 = vmatpush1.bf16.msra.mxu0 %v1784
          %1804 = vmatprep.subr.bf16.mxu0 0
          %1805 = vmatpush1.bf16.msra.mxu0 %v1783
          %1806 = vmatprep.subr.bf16.mxu0 0
          %1807 = vmatpush1.bf16.msra.mxu0 %v1782
          %1808 = vmatprep.subr.bf16.mxu0 0
          %1809 = vmatpush1.bf16.msra.mxu0 %v1781
          %1810 = vmatprep.subr.bf16.mxu0 0
          %1811 = vmatpush1.bf16.msra.mxu0 %v1780
          %1812 = vmatprep.subr.bf16.mxu0 0
          %1813 = vmatpush2.bf16.msra.mxu0 0
          %1814 = vmatprep.subr.bf16.mxu0 0
          %1815 = vmatpush2.bf16.msra.mxu0 0
          %1816 = vmatprep.subr.bf16.mxu0 0
          %1817 = vmatpush2.bf16.msra.mxu0 0
          %1818 = vmatprep.subr.bf16.mxu0 0
          %1819 = vmatpush2.bf16.msra.mxu0 0
          %1820 = vmatprep.subr.bf16.mxu0 0
          %1821 = vmatpush2.bf16.msra.mxu0 0
          %1822 = vmatprep.subr.bf16.mxu0 0
          %1823 = vmatpush2.bf16.msra.mxu0 0
          %1824 = vmatprep.subr.bf16.mxu0 0
          %1825 = vmatpush2.bf16.msra.mxu0 0
          %1826 = vmatprep.subr.bf16.mxu0 0
          %1827 = vmatpush2.bf16.msra.mxu0 0
          %1828 = vmatprep.mubr.bf16.mxu0 0
          %1829 = vmatmul.mubr.bf16.gmra.mxu0 %v1724
          %v1830 = vpop.f32.mrf.mxu0
          %v1831 = vadd.f32 %v1746, %v1830
          %v1832 = vpop.f32.mrf.mxu0
          %v1833 = vpop.f32.mrf.mxu0
          %v1834 = vpop.f32.mrf.mxu0
          %1835 = vdwg.mxu0
          %v1836 = vxor.u32 %v1831, 2147483648
          %v1837 = vmul.f32 %v1836, 1.442695
          %v1838 = vpow.pop %v1837
          %v1839 = vadd.f32 %v1838, 1.0
          %v1840 = vrcp.pop %v1839
          %v1841 = vmul.f32 1.0, %v1840
          %v1842 = vld [vmem:[%s18] sm:$0x1]
          %v1844 = vlaneseq
          %v1845 = vshrl.u32 %v1844, 7
          %v1846 = vsub.s32 0, %v1845
          %v1847 = vrot.slane %v1842, %v1846
          %v1849 = vmul.f32 %v1841, %v1847
          %v1850 = vsel %vm1055, %v1849, 0.0
          %1851 = vadd.xlane.f32.xlu0 %v1850
          %v1852 = vpop.xlane.xlu0 %1851
          %s1853 = sld [smem:[#allocation4]]
          %v1854 = vstv %s1853
          %v1855 = vadd.f32 %v1852, %v1854
          %vm1856 = vcmask 1024
          %1857 = vst.msk [vmem:[%s20] sm:$0x3] %vm1856, %v1855
        $region140: #{gatmannp_forward.1} parent=99 // pred_fallthru
          _
        // Predicated region
        $region141: #{gatmannp_forward.1} parent=99 // pred_check
          %p1858 = pneg %p486
        $region142: #{gatmannp_forward.1} parent=99 // pred_check_branch
          %1860 = sbr.rel (%p1858) target = $region144
        $region143: #{gatmannp_forward.1} parent=99 // pred_region
          _
        $region144: #{gatmannp_forward.1} parent=99 // pred_fallthru
          _
        // Predicated region
        $region145: #{gatmannp_forward.1} parent=99 // pred_check
          %p1861 = pneg %p486
        $region146: #{gatmannp_forward.1} parent=99 // pred_check_branch
          %1863 = sbr.rel (%p1861) target = $region148
        $region147: #{gatmannp_forward.1} parent=99 // pred_region
          _
        $region148: #{gatmannp_forward.1} parent=99 // pred_fallthru
          _
      $region100: #{gatmannp_forward.1} parent=5 // pred_fallthru
        _
      %p1864 = scmp.le.s32.totalorder 2, %s33
      // Predicated region
      $region149: #{gatmannp_forward.1} parent=5 // pred_check
        %p1865 = pneg %p1864
      $region150: #{gatmannp_forward.1} parent=5 // pred_check_branch
        %1867 = sbr.rel (%p1865) target = $region152
      $region151: #{gatmannp_forward.1} parent=5 // pred_region
        %s1868 = ssub.s32 %s33, 2
      $region152: #{gatmannp_forward.1} parent=5 // pred_fallthru
        _
    $region6: #{gatmannp_forward.1} parent=1 // loop_footer
      %s37 = sadd.s32 1, %s33
    $region7: #{gatmannp_forward.1} parent=1 // loop_footer_branch
      %32 = sbr.rel target = $region3
    $region8: #{gatmannp_forward.1} parent=1 // loop_exit
      _
    %1869 = vsyncpa [#allocation6], 1
    %s1870 = scalar_lea.sflag [#allocation6], 1
    %1871 = vsyncpa %s1870, 1
    %1872 = vsyncpa [#allocation8], 1
    %1873 = vsyncpa [#allocation11], 1
    %1874 = vsyncpa [#allocation14], 1
    %1875 = vsyncpa [#allocation17], 1

</llo_original>
